<compile_context>
chip_gen: v7x
topology: tpu7x:2x2x1
jax: 0.10.0
libtpu: 0.0.40
codegen_flags: <defaults>
</compile_context>

<pallas_src>
import functools

import numpy as np
import jax
import jax.numpy as jnp
from jax import lax
from jax.experimental import pallas as pl
from jax.experimental.pallas import tpu as pltpu


# ---------------------------------------------------------------------------
# Fused per-layer Pallas kernel
# ---------------------------------------------------------------------------
def _tgn_layer_kernel(x_ref, agg_ref, qw_ref, qb_ref, kvw_ref, kvb_ref,
                      ow_ref, ob_ref, f1a_ref, f1b_ref, f1c_ref,
                      f2w_ref, f2b_ref, o_ref, *, num_heads, head_dim):
    f32 = jnp.float32
    x = x_ref[...]          # (N, emb)   current-layer node features
    agg = agg_ref[...]      # (N, kdim)  aggregated neighbor|edge|time features
    qd = num_heads * head_dim

    # q projection (scale + time-zeros contribution pre-folded into qw/qb)
    q = jnp.dot(x, qw_ref[...], preferred_element_type=f32) + qb_ref[...]       # (N, qd)
    # fused K/V projection: one lane-dense (kdim, 2*qd) matmul, split after
    kv = jnp.dot(agg, kvw_ref[...], preferred_element_type=f32) + kvb_ref[...]  # (N, 2*qd)

    # per-head attention, statically unrolled (all heads in one kernel block)
    heads = []
    for h in range(num_heads):
        lo = h * head_dim
        hi = lo + head_dim
        qh = q[:, lo:hi]                    # (N, dh)  (already scaled)
        kh = kv[:, lo:hi]                   # (N, dh)
        vh = kv[:, qd + lo:qd + hi]         # (N, dh)
        # scores: contract last dims directly (no materialized K transpose)
        s = lax.dot_general(qh, kh, (((1,), (1,)), ((), ())),
                            preferred_element_type=f32)         # (N, N)
        s = s - jnp.max(s, axis=-1, keepdims=True)
        p = jnp.exp(s)
        attn = p * pl.reciprocal(jnp.sum(p, axis=-1, keepdims=True), approx=True)
        heads.append(jnp.dot(attn, vh, preferred_element_type=f32))  # (N, dh)
    core = jnp.concatenate(heads, axis=1)                            # (N, qd)

    # attention output projection
    attn_out = jnp.dot(core, ow_ref[...], preferred_element_type=f32) + ob_ref[...]

    # MLP on concat(out_nodes, attn_out): fc1 split into the two input halves
    hidden = (jnp.dot(x, f1a_ref[...], preferred_element_type=f32)
              + jnp.dot(attn_out, f1b_ref[...], preferred_element_type=f32)
              + f1c_ref[...])
    hidden = jnp.maximum(hidden, 0.0)
    out = jnp.dot(hidden, f2w_ref[...], preferred_element_type=f32) + f2b_ref[...]
    o_ref[...] = out.astype(o_ref.dtype)


def tgn_layer_fused(x, agg, fp, *, num_heads):
    """Run one full TGN attention+MLP layer in a single pallas_call."""
    n, _ = x.shape
    qd = fp["qw"].shape[1]
    dh = qd // num_heads
    emb_out = fp["f2w"].shape[1]

    args = (x, agg, fp["qw"], fp["qb"], fp["kvw"], fp["kvb"], fp["ow"], fp["ob"],
            fp["f1a"], fp["f1b"], fp["f1c"], fp["f2w"], fp["f2b"])

    def full_spec(a):
        # Whole array as one block (block_shape == array shape, so the
        # (8, 128) divisibility constraint does not apply).
        return pl.BlockSpec(a.shape, lambda i: (0,) * a.ndim)

    return pl.pallas_call(
        functools.partial(_tgn_layer_kernel, num_heads=num_heads, head_dim=dh),
        out_shape=jax.ShapeDtypeStruct((n, emb_out), jnp.float32),
        grid=(1,),
        in_specs=[full_spec(a) for a in args],
        out_specs=pl.BlockSpec((n, emb_out), lambda i: (0, 0)),
        compiler_params=pltpu.CompilerParams(dimension_semantics=("arbitrary",)),
    )(*args)


# ---------------------------------------------------------------------------
# Parameters (deterministic, synthetic) -- same structure as the PyTorch module
# ---------------------------------------------------------------------------
def init_params(key, cfg):
    emb = cfg["embedding_dimension"]
    qd = emb + cfg["time_encoding_dim"]                                # query_dim
    kd = emb + cfg["edge_feature_dim"] + cfg["time_encoding_dim"]      # key_dim
    kdim = kd * cfg["num_neighbors"]                                   # attention kdim/vdim

    def w_init(k, fan_in, fan_out):
        return jax.random.normal(k, (fan_in, fan_out), jnp.float32) / np.sqrt(fan_in)

    def b_init(k, fan_out):
        return 0.01 * jax.random.normal(k, (fan_out,), jnp.float32)

    params = []
    for _ in range(cfg["num_of_layers"]):
        keys = jax.random.split(key, 13)
        key = keys[0]
        p = {
            # nn.MultiheadAttention with kdim/vdim != embed_dim (separate proj weights)
            "q_w": w_init(keys[1], qd, qd),   "q_b": b_init(keys[2], qd),
            "k_w": w_init(keys[3], kdim, qd), "k_b": b_init(keys[4], qd),
            "v_w": w_init(keys[5], kdim, qd), "v_b": b_init(keys[6], qd),
            "o_w": w_init(keys[7], qd, qd),   "o_b": b_init(keys[8], qd),
            # MLP([query_dim + emb, emb, emb]) : Linear -> ReLU -> Linear
            "fc1_w": w_init(keys[9], qd + emb, emb),  "fc1_b": b_init(keys[10], emb),
            "fc2_w": w_init(keys[11], emb, emb),      "fc2_b": b_init(keys[12], emb),
        }
        params.append(p)
    return params


def _fuse_layer_params(p, time_encoder_zeros, emb, num_heads):
    """Host-side weight preprocessing: fold scale + time-zeros into q proj,
    fuse K/V weights into one lane-dense matrix, split fc1 by input half."""
    qd = p["q_w"].shape[1]
    dh = qd // num_heads
    scale = 1.0 / float(np.sqrt(dh))
    # query_concat = [out_nodes | tz] -> fold tz @ q_w[emb:] into the bias,
    # and the 1/sqrt(dh) attention scale into both weight and bias.
    qw = p["q_w"][:emb, :] * scale
    qb = (p["q_b"] + time_encoder_zeros[0] @ p["q_w"][emb:, :]) * scale
    kvw = jnp.concatenate((p["k_w"], p["v_w"]), axis=1)          # (kdim, 2*qd)
    kvb = jnp.concatenate((p["k_b"], p["v_b"]), axis=0)          # (2*qd,)
    f1a = p["fc1_w"][:emb, :]        # acts on out_nodes
    f1b = p["fc1_w"][emb:, :]        # acts on attn_out
    return dict(
        qw=qw, qb=qb.reshape(1, -1),
        kvw=kvw, kvb=kvb.reshape(1, -1),
        ow=p["o_w"], ob=p["o_b"].reshape(1, -1),
        f1a=f1a, f1b=f1b, f1c=p["fc1_b"].reshape(1, -1),
        f2w=p["fc2_w"], f2b=p["fc2_b"].reshape(1, -1),
    )


# ---------------------------------------------------------------------------
# Device-side forward: vectorized gathers + one fused kernel per layer,
# all under a single jax.jit (one dispatch for the whole forward pass).
# ---------------------------------------------------------------------------
def _device_forward(features, edge_all, time_all, layer_indices, fused_params,
                    *, num_heads, emb, nb, key_dim):
    out = features
    for k, (glob_idx, nbr_idx, cur_idx) in enumerate(layer_indices):
        n = cur_idx.shape[0]
        # _aggregate: single vectorized gather + concat (no per-node loop)
        feats_nb = jnp.take(out, nbr_idx.reshape(-1), axis=0).reshape(n, nb, emb)
        edge_sel = jnp.take(edge_all, glob_idx, axis=0)
        time_sel = jnp.take(time_all, glob_idx, axis=0)
        aggregate = jnp.concatenate((feats_nb, edge_sel, time_sel),
                                    axis=2).reshape(n, nb * key_dim)
        out_nodes = jnp.take(out, cur_idx, axis=0)                    # (N, emb)
        # fused attention + MLP layer (single pallas_call)
        out = tgn_layer_fused(out_nodes, aggregate, fused_params[k],
                              num_heads=num_heads)                    # (N, emb)
    return out


# ---------------------------------------------------------------------------
# Forward pass (mirrors TGNLayerGraphAttentionEmbedding.forward)
# ---------------------------------------------------------------------------
def tgn_graph_attention_forward(params, data, cfg):
    (node_layers, mappings, edge_layers, neighbors_arr, features,
     edge_features, time_features, time_encoder_zeros) = data

    num_heads = cfg["num_attention_heads"]
    emb = cfg["embedding_dimension"]
    nb = cfg["num_neighbors"]
    key_dim = emb + cfg["edge_feature_dim"] + cfg["time_encoding_dim"]

    # Stack the ragged python lists once (vectorized gathers on device).
    edge_all = jnp.stack(edge_features)      # (G, nb, edge_dim)
    time_all = jnp.stack(time_features)      # (G, nb, time_dim)

    fused = tuple(_fuse_layer_params(p, time_encoder_zeros, emb, num_heads)
                  for p in params)

    # Host-side dict lookups (pure Python graph bookkeeping from the spec)
    # produce int32 index arrays; everything downstream is vectorized.
    layer_indices = []
    for k in range(cfg["num_of_layers"]):
        mapping = mappings[k]
        nodes = node_layers[k + 1]
        glob = np.array([mappings[0][v, t] for v, t in nodes], dtype=np.int32)
        nbr = np.array([[mapping[vi, ti] for vi, ti in neighbors_arr[g]]
                        for g in glob], dtype=np.int32)                 # (N, nb)
        cur = np.array([mapping[v, t] for v, t in nodes], dtype=np.int32)
        layer_indices.append((jnp.asarray(glob), jnp.asarray(nbr),
                              jnp.asarray(cur)))
    layer_indices = tuple(layer_indices)

    fwd = jax.jit(functools.partial(_device_forward, num_heads=num_heads,
                                    emb=emb, nb=nb, key_dim=key_dim))
    return fwd(features, edge_all, time_all, layer_indices, fused)


# ---------------------------------------------------------------------------
# Pure NumPy reference (mirrors the PyTorch module) for a correctness check
# ---------------------------------------------------------------------------
def reference_forward(params, data, cfg):
    (node_layers, mappings, edge_layers, neighbors_arr, features,
     edge_features, time_features, time_encoder_zeros) = data
    num_heads = cfg["num_attention_heads"]
    out = np.asarray(features)
    tz = np.asarray(time_encoder_zeros)
    for k in range(cfg["num_of_layers"]):
        p = {kk: np.asarray(v) for kk, v in params[k].items()}
        mapping = mappings[k]
        nodes = node_layers[k + 1]
        glob = [mappings[0][v, t] for v, t in nodes]
        rows = []
        for g in glob:
            nbr = [mapping[vi, ti] for vi, ti in neighbors_arr[g]]
            rows.append(np.concatenate(
                (out[nbr], np.asarray(edge_features[g]),
                 np.asarray(time_features[g])), axis=1).reshape(-1))
        aggregate = np.stack(rows)                                  # (N, nb*kd)
        cur = [mapping[v, t] for v, t in nodes]
        out_nodes = out[cur]
        query = np.concatenate((out_nodes, np.repeat(tz, len(cur), axis=0)), axis=1)
        q = query @ p["q_w"] + p["q_b"]
        kmat = aggregate @ p["k_w"] + p["k_b"]
        vmat = aggregate @ p["v_w"] + p["v_b"]
        qd = q.shape[1]
        dh = qd // num_heads
        hs = []
        for h in range(num_heads):
            qh = q[:, h * dh:(h + 1) * dh] / np.sqrt(dh)
            kh = kmat[:, h * dh:(h + 1) * dh]
            vh = vmat[:, h * dh:(h + 1) * dh]
            s = qh @ kh.T
            s = s - s.max(axis=-1, keepdims=True)
            e = np.exp(s)
            hs.append((e / e.sum(axis=-1, keepdims=True)) @ vh)
        core = np.concatenate(hs, axis=1)
        attn_out = core @ p["o_w"] + p["o_b"]
        concat = np.concatenate((out_nodes, attn_out), axis=1)
        hidden = np.maximum(concat @ p["fc1_w"] + p["fc1_b"], 0.0)
        out = hidden @ p["fc2_w"] + p["fc2_b"]
    return out


# ---------------------------------------------------------------------------
# Synthetic example
# ---------------------------------------------------------------------------
if __name__ == "__main__":
    cfg = dict(
        embedding_dimension=32,
        edge_feature_dim=16,
        time_encoding_dim=32,
        node_features_dim=32,
        num_neighbors=4,
        num_of_layers=2,
        num_attention_heads=2,
    )
    emb = cfg["embedding_dimension"]
    nb = cfg["num_neighbors"]
    N = 8  # nodes in the sampled neighborhood

    key = jax.random.PRNGKey(0)
    k_feat, k_edge, k_time, k_tz, k_param = jax.random.split(key, 5)

    # graph bookkeeping (same node set at every layer for this synthetic case)
    nodes = [(v, 100 + v) for v in range(N)]
    mapping = {nt: i for i, nt in enumerate(nodes)}
    node_layers = [list(nodes) for _ in range(cfg["num_of_layers"] + 1)]
    mappings = [dict(mapping) for _ in range(cfg["num_of_layers"] + 1)]
    edge_layers = [list(range(N)) for _ in range(cfg["num_of_layers"] + 1)]
    neighbors_arr = [[nodes[(i + 1 + m) % N] for m in range(nb)] for i in range(N)]

    features = jax.random.normal(k_feat, (N, emb), jnp.float32)
    edge_features = [
        jax.random.normal(jax.random.fold_in(k_edge, i),
                          (nb, cfg["edge_feature_dim"]), jnp.float32)
        for i in range(N)
    ]
    time_features = [
        jax.random.normal(jax.random.fold_in(k_time, i),
                          (nb, cfg["time_encoding_dim"]), jnp.float32)
        for i in range(N)
    ]
    time_encoder_zeros = jax.random.normal(k_tz, (1, cfg["time_encoding_dim"]),
                                           jnp.float32)

    data = (node_layers, mappings, edge_layers, neighbors_arr, features,
            edge_features, time_features, time_encoder_zeros)

    params = init_params(k_param, cfg)

    out = tgn_graph_attention_forward(params, data, cfg)
    jax.block_until_ready(out)
    assert out.shape == (N, emb)
    assert bool(jnp.all(jnp.isfinite(out)))

    # correctness check against the NumPy reference of the PyTorch module
    # (loose tolerance accounts for the approx EUP reciprocal in the softmax)
    ref = reference_forward(params, data, cfg)
    np.testing.assert_allclose(np.asarray(out), ref, rtol=1e-2, atol=1e-2)

    print("KERNEL_OK")
</pallas_src>

<mosaic_0001>
module attributes {stable_mosaic.version = 11 : i64} {
  func.func @_tgn_layer_kernel(%arg0: i32, %arg1: memref<8x32xf32, #tpu.memory_space<vmem>>, %arg2: memref<8x320xf32, #tpu.memory_space<vmem>>, %arg3: memref<32x64xf32, #tpu.memory_space<vmem>>, %arg4: memref<1x64xf32, #tpu.memory_space<vmem>>, %arg5: memref<320x128xf32, #tpu.memory_space<vmem>>, %arg6: memref<1x128xf32, #tpu.memory_space<vmem>>, %arg7: memref<64x64xf32, #tpu.memory_space<vmem>>, %arg8: memref<1x64xf32, #tpu.memory_space<vmem>>, %arg9: memref<32x32xf32, #tpu.memory_space<vmem>>, %arg10: memref<64x32xf32, #tpu.memory_space<vmem>>, %arg11: memref<1x32xf32, #tpu.memory_space<vmem>>, %arg12: memref<32x32xf32, #tpu.memory_space<vmem>>, %arg13: memref<1x32xf32, #tpu.memory_space<vmem>>, %arg14: memref<8x32xf32, #tpu.memory_space<vmem>>) attributes {dimension_semantics = [#tpu.dimension_semantics<arbitrary>], iteration_bounds = array<i64: 1>, scalar_prefetch = 0 : i64, scratch_operands = 0 : i64, tpu.core_type = #tpu.core_type<tc>, window_params = [{pipeline_mode = #tpu.pipeline_mode<synchronous>, transform_indices = @transform_0, window_bounds = array<i64: 8, 32>}, {pipeline_mode = #tpu.pipeline_mode<synchronous>, transform_indices = @transform_1, window_bounds = array<i64: 8, 320>}, {pipeline_mode = #tpu.pipeline_mode<synchronous>, transform_indices = @transform_2, window_bounds = array<i64: 32, 64>}, {pipeline_mode = #tpu.pipeline_mode<synchronous>, transform_indices = @transform_3, window_bounds = array<i64: 1, 64>}, {pipeline_mode = #tpu.pipeline_mode<synchronous>, transform_indices = @transform_4, window_bounds = array<i64: 320, 128>}, {pipeline_mode = #tpu.pipeline_mode<synchronous>, transform_indices = @transform_5, window_bounds = array<i64: 1, 128>}, {pipeline_mode = #tpu.pipeline_mode<synchronous>, transform_indices = @transform_6, window_bounds = array<i64: 64, 64>}, {pipeline_mode = #tpu.pipeline_mode<synchronous>, transform_indices = @transform_7, window_bounds = array<i64: 1, 64>}, {pipeline_mode = #tpu.pipeline_mode<synchronous>, transform_indices = @transform_8, window_bounds = array<i64: 32, 32>}, {pipeline_mode = #tpu.pipeline_mode<synchronous>, transform_indices = @transform_9, window_bounds = array<i64: 64, 32>}, {pipeline_mode = #tpu.pipeline_mode<synchronous>, transform_indices = @transform_10, window_bounds = array<i64: 1, 32>}, {pipeline_mode = #tpu.pipeline_mode<synchronous>, transform_indices = @transform_11, window_bounds = array<i64: 32, 32>}, {pipeline_mode = #tpu.pipeline_mode<synchronous>, transform_indices = @transform_12, window_bounds = array<i64: 1, 32>}, {pipeline_mode = #tpu.pipeline_mode<synchronous>, transform_indices = @transform_13, window_bounds = array<i64: 8, 32>}]} {
    %c0 = arith.constant 0 : index
    %c0_0 = arith.constant 0 : index
    %0 = vector.load %arg1[%c0, %c0_0] : memref<8x32xf32, #tpu.memory_space<vmem>>, vector<8x32xf32>
    %c0_1 = arith.constant 0 : index
    %c0_2 = arith.constant 0 : index
    %1 = vector.load %arg2[%c0_1, %c0_2] : memref<8x320xf32, #tpu.memory_space<vmem>>, vector<8x320xf32>
    %c0_3 = arith.constant 0 : index
    %c0_4 = arith.constant 0 : index
    %2 = vector.load %arg3[%c0_3, %c0_4] : memref<32x64xf32, #tpu.memory_space<vmem>>, vector<32x64xf32>
    %cst = arith.constant dense<0.000000e+00> : vector<8x64xf32>
    %3 = tpu.matmul %0, %2, %cst {dimension_numbers = #tpu.dot_dimension_numbers<[1], [0], [0], [1], [0, 0, 1, 1], [], []>} : vector<8x32xf32>, vector<32x64xf32>, vector<8x64xf32> -> vector<8x64xf32>
    %c0_5 = arith.constant 0 : index
    %c0_6 = arith.constant 0 : index
    %4 = vector.load %arg4[%c0_5, %c0_6] : memref<1x64xf32, #tpu.memory_space<vmem>>, vector<1x64xf32>
    %5 = vector.broadcast %4 : vector<1x64xf32> to vector<8x64xf32>
    %6 = arith.addf %3, %5 : vector<8x64xf32>
    %c0_7 = arith.constant 0 : index
    %c0_8 = arith.constant 0 : index
    %7 = vector.load %arg5[%c0_7, %c0_8] : memref<320x128xf32, #tpu.memory_space<vmem>>, vector<320x128xf32>
    %cst_9 = arith.constant dense<0.000000e+00> : vector<8x128xf32>
    %8 = tpu.matmul %1, %7, %cst_9 {dimension_numbers = #tpu.dot_dimension_numbers<[1], [0], [0], [1], [0, 0, 1, 1], [], []>} : vector<8x320xf32>, vector<320x128xf32>, vector<8x128xf32> -> vector<8x128xf32>
    %c0_10 = arith.constant 0 : index
    %c0_11 = arith.constant 0 : index
    %9 = vector.load %arg6[%c0_10, %c0_11] : memref<1x128xf32, #tpu.memory_space<vmem>>, vector<1x128xf32>
    %10 = vector.broadcast %9 : vector<1x128xf32> to vector<8x128xf32>
    %11 = arith.addf %8, %10 : vector<8x128xf32>
    %12 = vector.extract_strided_slice %6 {offsets = [0, 0], sizes = [8, 32], strides = [1, 1]} : vector<8x64xf32> to vector<8x32xf32>
    %13 = vector.extract_strided_slice %11 {offsets = [0, 0], sizes = [8, 32], strides = [1, 1]} : vector<8x128xf32> to vector<8x32xf32>
    %14 = vector.extract_strided_slice %11 {offsets = [0, 64], sizes = [8, 32], strides = [1, 1]} : vector<8x128xf32> to vector<8x32xf32>
    %cst_12 = arith.constant dense<0.000000e+00> : vector<8x8xf32>
    %15 = tpu.matmul %12, %13, %cst_12 {dimension_numbers = #tpu.dot_dimension_numbers<[1], [1], [0], [0], [0, 0, 1, 0], [], []>} : vector<8x32xf32>, vector<8x32xf32>, vector<8x8xf32> -> vector<8x8xf32>
    %cst_13 = arith.constant dense<0xFF800000> : vector<8xf32>
    %16 = vector.multi_reduction <maximumf>, %15, %cst_13 [1] : vector<8x8xf32> to vector<8xf32>
    %17 = vector.shape_cast %16 : vector<8xf32> to vector<8x1xf32>
    %18 = vector.broadcast %17 : vector<8x1xf32> to vector<8x8xf32>
    %19 = arith.subf %15, %18 : vector<8x8xf32>
    %20 = math.exp %19 : vector<8x8xf32>
    %cst_14 = arith.constant dense<0.000000e+00> : vector<8xf32>
    %21 = vector.multi_reduction <add>, %20, %cst_14 [1] : vector<8x8xf32> to vector<8xf32>
    %22 = vector.shape_cast %21 : vector<8xf32> to vector<8x1xf32>
    %23 = tpu.reciprocal %22 {approx = true} : vector<8x1xf32> -> vector<8x1xf32>
    %24 = vector.broadcast %23 : vector<8x1xf32> to vector<8x8xf32>
    %25 = arith.mulf %20, %24 : vector<8x8xf32>
    %cst_15 = arith.constant dense<0.000000e+00> : vector<8x32xf32>
    %26 = tpu.matmul %25, %14, %cst_15 {dimension_numbers = #tpu.dot_dimension_numbers<[1], [0], [0], [1], [0, 0, 1, 1], [], []>} : vector<8x8xf32>, vector<8x32xf32>, vector<8x32xf32> -> vector<8x32xf32>
    %27 = vector.extract_strided_slice %6 {offsets = [0, 32], sizes = [8, 32], strides = [1, 1]} : vector<8x64xf32> to vector<8x32xf32>
    %28 = vector.extract_strided_slice %11 {offsets = [0, 32], sizes = [8, 32], strides = [1, 1]} : vector<8x128xf32> to vector<8x32xf32>
    %29 = vector.extract_strided_slice %11 {offsets = [0, 96], sizes = [8, 32], strides = [1, 1]} : vector<8x128xf32> to vector<8x32xf32>
    %cst_16 = arith.constant dense<0.000000e+00> : vector<8x8xf32>
    %30 = tpu.matmul %27, %28, %cst_16 {dimension_numbers = #tpu.dot_dimension_numbers<[1], [1], [0], [0], [0, 0, 1, 0], [], []>} : vector<8x32xf32>, vector<8x32xf32>, vector<8x8xf32> -> vector<8x8xf32>
    %cst_17 = arith.constant dense<0xFF800000> : vector<8xf32>
    %31 = vector.multi_reduction <maximumf>, %30, %cst_17 [1] : vector<8x8xf32> to vector<8xf32>
    %32 = vector.shape_cast %31 : vector<8xf32> to vector<8x1xf32>
    %33 = vector.broadcast %32 : vector<8x1xf32> to vector<8x8xf32>
    %34 = arith.subf %30, %33 : vector<8x8xf32>
    %35 = math.exp %34 : vector<8x8xf32>
    %cst_18 = arith.constant dense<0.000000e+00> : vector<8xf32>
    %36 = vector.multi_reduction <add>, %35, %cst_18 [1] : vector<8x8xf32> to vector<8xf32>
    %37 = vector.shape_cast %36 : vector<8xf32> to vector<8x1xf32>
    %38 = tpu.reciprocal %37 {approx = true} : vector<8x1xf32> -> vector<8x1xf32>
    %39 = vector.broadcast %38 : vector<8x1xf32> to vector<8x8xf32>
    %40 = arith.mulf %35, %39 : vector<8x8xf32>
    %cst_19 = arith.constant dense<0.000000e+00> : vector<8x32xf32>
    %41 = tpu.matmul %40, %29, %cst_19 {dimension_numbers = #tpu.dot_dimension_numbers<[1], [0], [0], [1], [0, 0, 1, 1], [], []>} : vector<8x8xf32>, vector<8x32xf32>, vector<8x32xf32> -> vector<8x32xf32>
    %42 = tpu.concatenate %26, %41 in 1 : vector<8x32xf32>, vector<8x32xf32> -> vector<8x64xf32>
    %c0_20 = arith.constant 0 : index
    %c0_21 = arith.constant 0 : index
    %43 = vector.load %arg7[%c0_20, %c0_21] : memref<64x64xf32, #tpu.memory_space<vmem>>, vector<64x64xf32>
    %cst_22 = arith.constant dense<0.000000e+00> : vector<8x64xf32>
    %44 = tpu.matmul %42, %43, %cst_22 {dimension_numbers = #tpu.dot_dimension_numbers<[1], [0], [0], [1], [0, 0, 1, 1], [], []>} : vector<8x64xf32>, vector<64x64xf32>, vector<8x64xf32> -> vector<8x64xf32>
    %c0_23 = arith.constant 0 : index
    %c0_24 = arith.constant 0 : index
    %45 = vector.load %arg8[%c0_23, %c0_24] : memref<1x64xf32, #tpu.memory_space<vmem>>, vector<1x64xf32>
    %46 = vector.broadcast %45 : vector<1x64xf32> to vector<8x64xf32>
    %47 = arith.addf %44, %46 : vector<8x64xf32>
    %c0_25 = arith.constant 0 : index
    %c0_26 = arith.constant 0 : index
    %48 = vector.load %arg9[%c0_25, %c0_26] : memref<32x32xf32, #tpu.memory_space<vmem>>, vector<32x32xf32>
    %cst_27 = arith.constant dense<0.000000e+00> : vector<8x32xf32>
    %49 = tpu.matmul %0, %48, %cst_27 {dimension_numbers = #tpu.dot_dimension_numbers<[1], [0], [0], [1], [0, 0, 1, 1], [], []>} : vector<8x32xf32>, vector<32x32xf32>, vector<8x32xf32> -> vector<8x32xf32>
    %c0_28 = arith.constant 0 : index
    %c0_29 = arith.constant 0 : index
    %50 = vector.load %arg10[%c0_28, %c0_29] : memref<64x32xf32, #tpu.memory_space<vmem>>, vector<64x32xf32>
    %cst_30 = arith.constant dense<0.000000e+00> : vector<8x32xf32>
    %51 = tpu.matmul %47, %50, %cst_30 {dimension_numbers = #tpu.dot_dimension_numbers<[1], [0], [0], [1], [0, 0, 1, 1], [], []>} : vector<8x64xf32>, vector<64x32xf32>, vector<8x32xf32> -> vector<8x32xf32>
    %52 = arith.addf %49, %51 : vector<8x32xf32>
    %c0_31 = arith.constant 0 : index
    %c0_32 = arith.constant 0 : index
    %53 = vector.load %arg11[%c0_31, %c0_32] : memref<1x32xf32, #tpu.memory_space<vmem>>, vector<1x32xf32>
    %54 = vector.broadcast %53 : vector<1x32xf32> to vector<8x32xf32>
    %55 = arith.addf %52, %54 : vector<8x32xf32>
    %cst_33 = arith.constant 0.000000e+00 : f32
    %56 = vector.broadcast %cst_33 : f32 to vector<8x32xf32>
    %57 = arith.maximumf %55, %56 : vector<8x32xf32>
    %c0_34 = arith.constant 0 : index
    %c0_35 = arith.constant 0 : index
    %58 = vector.load %arg12[%c0_34, %c0_35] : memref<32x32xf32, #tpu.memory_space<vmem>>, vector<32x32xf32>
    %cst_36 = arith.constant dense<0.000000e+00> : vector<8x32xf32>
    %59 = tpu.matmul %57, %58, %cst_36 {dimension_numbers = #tpu.dot_dimension_numbers<[1], [0], [0], [1], [0, 0, 1, 1], [], []>} : vector<8x32xf32>, vector<32x32xf32>, vector<8x32xf32> -> vector<8x32xf32>
    %c0_37 = arith.constant 0 : index
    %c0_38 = arith.constant 0 : index
    %60 = vector.load %arg13[%c0_37, %c0_38] : memref<1x32xf32, #tpu.memory_space<vmem>>, vector<1x32xf32>
    %61 = vector.broadcast %60 : vector<1x32xf32> to vector<8x32xf32>
    %62 = arith.addf %59, %61 : vector<8x32xf32>
    %c0_39 = arith.constant 0 : index
    %c0_40 = arith.constant 0 : index
    %63 = vector.load %arg14[%c0_39, %c0_40] : memref<8x32xf32, #tpu.memory_space<vmem>>, vector<8x32xf32>
    tpu.vector_store %arg14[%c0_39, %c0_40], %62 {strides = array<i32>} : memref<8x32xf32, #tpu.memory_space<vmem>>, vector<8x32xf32>,
    return
  }
  func.func @transform_0(%arg0: i32) -> (i32, i32) {
    %c0_i32 = arith.constant 0 : i32
    %c0_i32_0 = arith.constant 0 : i32
    %c0_i32_1 = arith.constant 0 : i32
    return %c0_i32, %c0_i32_0 : i32, i32
  }
  func.func @transform_1(%arg0: i32) -> (i32, i32) {
    %c0_i32 = arith.constant 0 : i32
    %c0_i32_0 = arith.constant 0 : i32
    %c0_i32_1 = arith.constant 0 : i32
    return %c0_i32, %c0_i32_0 : i32, i32
  }
  func.func @transform_2(%arg0: i32) -> (i32, i32) {
    %c0_i32 = arith.constant 0 : i32
    %c0_i32_0 = arith.constant 0 : i32
    %c0_i32_1 = arith.constant 0 : i32
    return %c0_i32, %c0_i32_0 : i32, i32
  }
  func.func @transform_3(%arg0: i32) -> (i32, i32) {
    %c0_i32 = arith.constant 0 : i32
    %c0_i32_0 = arith.constant 0 : i32
    %c0_i32_1 = arith.constant 0 : i32
    return %c0_i32, %c0_i32_0 : i32, i32
  }
  func.func @transform_4(%arg0: i32) -> (i32, i32) {
    %c0_i32 = arith.constant 0 : i32
    %c0_i32_0 = arith.constant 0 : i32
    %c0_i32_1 = arith.constant 0 : i32
    return %c0_i32, %c0_i32_0 : i32, i32
  }
  func.func @transform_5(%arg0: i32) -> (i32, i32) {
    %c0_i32 = arith.constant 0 : i32
    %c0_i32_0 = arith.constant 0 : i32
    %c0_i32_1 = arith.constant 0 : i32
    return %c0_i32, %c0_i32_0 : i32, i32
  }
  func.func @transform_6(%arg0: i32) -> (i32, i32) {
    %c0_i32 = arith.constant 0 : i32
    %c0_i32_0 = arith.constant 0 : i32
    %c0_i32_1 = arith.constant 0 : i32
    return %c0_i32, %c0_i32_0 : i32, i32
  }
  func.func @transform_7(%arg0: i32) -> (i32, i32) {
    %c0_i32 = arith.constant 0 : i32
    %c0_i32_0 = arith.constant 0 : i32
    %c0_i32_1 = arith.constant 0 : i32
    return %c0_i32, %c0_i32_0 : i32, i32
  }
  func.func @transform_8(%arg0: i32) -> (i32, i32) {
    %c0_i32 = arith.constant 0 : i32
    %c0_i32_0 = arith.constant 0 : i32
    %c0_i32_1 = arith.constant 0 : i32
    return %c0_i32, %c0_i32_0 : i32, i32
  }
  func.func @transform_9(%arg0: i32) -> (i32, i32) {
    %c0_i32 = arith.constant 0 : i32
    %c0_i32_0 = arith.constant 0 : i32
    %c0_i32_1 = arith.constant 0 : i32
    return %c0_i32, %c0_i32_0 : i32, i32
  }
  func.func @transform_10(%arg0: i32) -> (i32, i32) {
    %c0_i32 = arith.constant 0 : i32
    %c0_i32_0 = arith.constant 0 : i32
    %c0_i32_1 = arith.constant 0 : i32
    return %c0_i32, %c0_i32_0 : i32, i32
  }
  func.func @transform_11(%arg0: i32) -> (i32, i32) {
    %c0_i32 = arith.constant 0 : i32
    %c0_i32_0 = arith.constant 0 : i32
    %c0_i32_1 = arith.constant 0 : i32
    return %c0_i32, %c0_i32_0 : i32, i32
  }
  func.func @transform_12(%arg0: i32) -> (i32, i32) {
    %c0_i32 = arith.constant 0 : i32
    %c0_i32_0 = arith.constant 0 : i32
    %c0_i32_1 = arith.constant 0 : i32
    return %c0_i32, %c0_i32_0 : i32, i32
  }
  func.func @transform_13(%arg0: i32) -> (i32, i32) {
    %c0_i32 = arith.constant 0 : i32
    %c0_i32_0 = arith.constant 0 : i32
    %c0_i32_1 = arith.constant 0 : i32
    return %c0_i32, %c0_i32_0 : i32, i32
  }
}

module attributes {stable_mosaic.version = 11 : i64} {
  func.func @_tgn_layer_kernel(%arg0: i32, %arg1: memref<8x32xf32, #tpu.memory_space<vmem>>, %arg2: memref<8x320xf32, #tpu.memory_space<vmem>>, %arg3: memref<32x64xf32, #tpu.memory_space<vmem>>, %arg4: memref<1x64xf32, #tpu.memory_space<vmem>>, %arg5: memref<320x128xf32, #tpu.memory_space<vmem>>, %arg6: memref<1x128xf32, #tpu.memory_space<vmem>>, %arg7: memref<64x64xf32, #tpu.memory_space<vmem>>, %arg8: memref<1x64xf32, #tpu.memory_space<vmem>>, %arg9: memref<32x32xf32, #tpu.memory_space<vmem>>, %arg10: memref<64x32xf32, #tpu.memory_space<vmem>>, %arg11: memref<1x32xf32, #tpu.memory_space<vmem>>, %arg12: memref<32x32xf32, #tpu.memory_space<vmem>>, %arg13: memref<1x32xf32, #tpu.memory_space<vmem>>, %arg14: memref<8x32xf32, #tpu.memory_space<vmem>>) attributes {dimension_semantics = [#tpu.dimension_semantics<arbitrary>], iteration_bounds = array<i64: 1>, scalar_prefetch = 0 : i64, scratch_operands = 0 : i64, tpu.core_type = #tpu.core_type<tc>, window_params = [{pipeline_mode = #tpu.pipeline_mode<synchronous>, transform_indices = @transform_0, window_bounds = array<i64: 8, 32>}, {pipeline_mode = #tpu.pipeline_mode<synchronous>, transform_indices = @transform_1, window_bounds = array<i64: 8, 320>}, {pipeline_mode = #tpu.pipeline_mode<synchronous>, transform_indices = @transform_2, window_bounds = array<i64: 32, 64>}, {pipeline_mode = #tpu.pipeline_mode<synchronous>, transform_indices = @transform_3, window_bounds = array<i64: 1, 64>}, {pipeline_mode = #tpu.pipeline_mode<synchronous>, transform_indices = @transform_4, window_bounds = array<i64: 320, 128>}, {pipeline_mode = #tpu.pipeline_mode<synchronous>, transform_indices = @transform_5, window_bounds = array<i64: 1, 128>}, {pipeline_mode = #tpu.pipeline_mode<synchronous>, transform_indices = @transform_6, window_bounds = array<i64: 64, 64>}, {pipeline_mode = #tpu.pipeline_mode<synchronous>, transform_indices = @transform_7, window_bounds = array<i64: 1, 64>}, {pipeline_mode = #tpu.pipeline_mode<synchronous>, transform_indices = @transform_8, window_bounds = array<i64: 32, 32>}, {pipeline_mode = #tpu.pipeline_mode<synchronous>, transform_indices = @transform_9, window_bounds = array<i64: 64, 32>}, {pipeline_mode = #tpu.pipeline_mode<synchronous>, transform_indices = @transform_10, window_bounds = array<i64: 1, 32>}, {pipeline_mode = #tpu.pipeline_mode<synchronous>, transform_indices = @transform_11, window_bounds = array<i64: 32, 32>}, {pipeline_mode = #tpu.pipeline_mode<synchronous>, transform_indices = @transform_12, window_bounds = array<i64: 1, 32>}, {pipeline_mode = #tpu.pipeline_mode<synchronous>, transform_indices = @transform_13, window_bounds = array<i64: 8, 32>}]} {
    %c0 = arith.constant 0 : index
    %c0_0 = arith.constant 0 : index
    %0 = vector.load %arg1[%c0, %c0_0] : memref<8x32xf32, #tpu.memory_space<vmem>>, vector<8x32xf32>
    %c0_1 = arith.constant 0 : index
    %c0_2 = arith.constant 0 : index
    %1 = vector.load %arg2[%c0_1, %c0_2] : memref<8x320xf32, #tpu.memory_space<vmem>>, vector<8x320xf32>
    %c0_3 = arith.constant 0 : index
    %c0_4 = arith.constant 0 : index
    %2 = vector.load %arg3[%c0_3, %c0_4] : memref<32x64xf32, #tpu.memory_space<vmem>>, vector<32x64xf32>
    %cst = arith.constant dense<0.000000e+00> : vector<8x64xf32>
    %3 = tpu.matmul %0, %2, %cst {dimension_numbers = #tpu.dot_dimension_numbers<[1], [0], [0], [1], [0, 0, 1, 1], [], []>} : vector<8x32xf32>, vector<32x64xf32>, vector<8x64xf32> -> vector<8x64xf32>
    %c0_5 = arith.constant 0 : index
    %c0_6 = arith.constant 0 : index
    %4 = vector.load %arg4[%c0_5, %c0_6] : memref<1x64xf32, #tpu.memory_space<vmem>>, vector<1x64xf32>
    %5 = vector.broadcast %4 : vector<1x64xf32> to vector<8x64xf32>
    %6 = arith.addf %3, %5 : vector<8x64xf32>
    %c0_7 = arith.constant 0 : index
    %c0_8 = arith.constant 0 : index
    %7 = vector.load %arg5[%c0_7, %c0_8] : memref<320x128xf32, #tpu.memory_space<vmem>>, vector<320x128xf32>
    %cst_9 = arith.constant dense<0.000000e+00> : vector<8x128xf32>
    %8 = tpu.matmul %1, %7, %cst_9 {dimension_numbers = #tpu.dot_dimension_numbers<[1], [0], [0], [1], [0, 0, 1, 1], [], []>} : vector<8x320xf32>, vector<320x128xf32>, vector<8x128xf32> -> vector<8x128xf32>
    %c0_10 = arith.constant 0 : index
    %c0_11 = arith.constant 0 : index
    %9 = vector.load %arg6[%c0_10, %c0_11] : memref<1x128xf32, #tpu.memory_space<vmem>>, vector<1x128xf32>
    %10 = vector.broadcast %9 : vector<1x128xf32> to vector<8x128xf32>
    %11 = arith.addf %8, %10 : vector<8x128xf32>
    %12 = vector.extract_strided_slice %6 {offsets = [0, 0], sizes = [8, 32], strides = [1, 1]} : vector<8x64xf32> to vector<8x32xf32>
    %13 = vector.extract_strided_slice %11 {offsets = [0, 0], sizes = [8, 32], strides = [1, 1]} : vector<8x128xf32> to vector<8x32xf32>
    %14 = vector.extract_strided_slice %11 {offsets = [0, 64], sizes = [8, 32], strides = [1, 1]} : vector<8x128xf32> to vector<8x32xf32>
    %cst_12 = arith.constant dense<0.000000e+00> : vector<8x8xf32>
    %15 = tpu.matmul %12, %13, %cst_12 {dimension_numbers = #tpu.dot_dimension_numbers<[1], [1], [0], [0], [0, 0, 1, 0], [], []>} : vector<8x32xf32>, vector<8x32xf32>, vector<8x8xf32> -> vector<8x8xf32>
    %cst_13 = arith.constant dense<0xFF800000> : vector<8xf32>
    %16 = vector.multi_reduction <maximumf>, %15, %cst_13 [1] : vector<8x8xf32> to vector<8xf32>
    %17 = vector.shape_cast %16 : vector<8xf32> to vector<8x1xf32>
    %18 = vector.broadcast %17 : vector<8x1xf32> to vector<8x8xf32>
    %19 = arith.subf %15, %18 : vector<8x8xf32>
    %20 = math.exp %19 : vector<8x8xf32>
    %cst_14 = arith.constant dense<0.000000e+00> : vector<8xf32>
    %21 = vector.multi_reduction <add>, %20, %cst_14 [1] : vector<8x8xf32> to vector<8xf32>
    %22 = vector.shape_cast %21 : vector<8xf32> to vector<8x1xf32>
    %23 = tpu.reciprocal %22 {approx = true} : vector<8x1xf32> -> vector<8x1xf32>
    %24 = vector.broadcast %23 : vector<8x1xf32> to vector<8x8xf32>
    %25 = arith.mulf %20, %24 : vector<8x8xf32>
    %cst_15 = arith.constant dense<0.000000e+00> : vector<8x32xf32>
    %26 = tpu.matmul %25, %14, %cst_15 {dimension_numbers = #tpu.dot_dimension_numbers<[1], [0], [0], [1], [0, 0, 1, 1], [], []>} : vector<8x8xf32>, vector<8x32xf32>, vector<8x32xf32> -> vector<8x32xf32>
    %27 = vector.extract_strided_slice %6 {offsets = [0, 32], sizes = [8, 32], strides = [1, 1]} : vector<8x64xf32> to vector<8x32xf32>
    %28 = vector.extract_strided_slice %11 {offsets = [0, 32], sizes = [8, 32], strides = [1, 1]} : vector<8x128xf32> to vector<8x32xf32>
    %29 = vector.extract_strided_slice %11 {offsets = [0, 96], sizes = [8, 32], strides = [1, 1]} : vector<8x128xf32> to vector<8x32xf32>
    %cst_16 = arith.constant dense<0.000000e+00> : vector<8x8xf32>
    %30 = tpu.matmul %27, %28, %cst_16 {dimension_numbers = #tpu.dot_dimension_numbers<[1], [1], [0], [0], [0, 0, 1, 0], [], []>} : vector<8x32xf32>, vector<8x32xf32>, vector<8x8xf32> -> vector<8x8xf32>
    %cst_17 = arith.constant dense<0xFF800000> : vector<8xf32>
    %31 = vector.multi_reduction <maximumf>, %30, %cst_17 [1] : vector<8x8xf32> to vector<8xf32>
    %32 = vector.shape_cast %31 : vector<8xf32> to vector<8x1xf32>
    %33 = vector.broadcast %32 : vector<8x1xf32> to vector<8x8xf32>
    %34 = arith.subf %30, %33 : vector<8x8xf32>
    %35 = math.exp %34 : vector<8x8xf32>
    %cst_18 = arith.constant dense<0.000000e+00> : vector<8xf32>
    %36 = vector.multi_reduction <add>, %35, %cst_18 [1] : vector<8x8xf32> to vector<8xf32>
    %37 = vector.shape_cast %36 : vector<8xf32> to vector<8x1xf32>
    %38 = tpu.reciprocal %37 {approx = true} : vector<8x1xf32> -> vector<8x1xf32>
    %39 = vector.broadcast %38 : vector<8x1xf32> to vector<8x8xf32>
    %40 = arith.mulf %35, %39 : vector<8x8xf32>
    %cst_19 = arith.constant dense<0.000000e+00> : vector<8x32xf32>
    %41 = tpu.matmul %40, %29, %cst_19 {dimension_numbers = #tpu.dot_dimension_numbers<[1], [0], [0], [1], [0, 0, 1, 1], [], []>} : vector<8x8xf32>, vector<8x32xf32>, vector<8x32xf32> -> vector<8x32xf32>
    %42 = tpu.concatenate %26, %41 in 1 : vector<8x32xf32>, vector<8x32xf32> -> vector<8x64xf32>
    %c0_20 = arith.constant 0 : index
    %c0_21 = arith.constant 0 : index
    %43 = vector.load %arg7[%c0_20, %c0_21] : memref<64x64xf32, #tpu.memory_space<vmem>>, vector<64x64xf32>
    %cst_22 = arith.constant dense<0.000000e+00> : vector<8x64xf32>
    %44 = tpu.matmul %42, %43, %cst_22 {dimension_numbers = #tpu.dot_dimension_numbers<[1], [0], [0], [1], [0, 0, 1, 1], [], []>} : vector<8x64xf32>, vector<64x64xf32>, vector<8x64xf32> -> vector<8x64xf32>
    %c0_23 = arith.constant 0 : index
    %c0_24 = arith.constant 0 : index
    %45 = vector.load %arg8[%c0_23, %c0_24] : memref<1x64xf32, #tpu.memory_space<vmem>>, vector<1x64xf32>
    %46 = vector.broadcast %45 : vector<1x64xf32> to vector<8x64xf32>
    %47 = arith.addf %44, %46 : vector<8x64xf32>
    %c0_25 = arith.constant 0 : index
    %c0_26 = arith.constant 0 : index
    %48 = vector.load %arg9[%c0_25, %c0_26] : memref<32x32xf32, #tpu.memory_space<vmem>>, vector<32x32xf32>
    %cst_27 = arith.constant dense<0.000000e+00> : vector<8x32xf32>
    %49 = tpu.matmul %0, %48, %cst_27 {dimension_numbers = #tpu.dot_dimension_numbers<[1], [0], [0], [1], [0, 0, 1, 1], [], []>} : vector<8x32xf32>, vector<32x32xf32>, vector<8x32xf32> -> vector<8x32xf32>
    %c0_28 = arith.constant 0 : index
    %c0_29 = arith.constant 0 : index
    %50 = vector.load %arg10[%c0_28, %c0_29] : memref<64x32xf32, #tpu.memory_space<vmem>>, vector<64x32xf32>
    %cst_30 = arith.constant dense<0.000000e+00> : vector<8x32xf32>
    %51 = tpu.matmul %47, %50, %cst_30 {dimension_numbers = #tpu.dot_dimension_numbers<[1], [0], [0], [1], [0, 0, 1, 1], [], []>} : vector<8x64xf32>, vector<64x32xf32>, vector<8x32xf32> -> vector<8x32xf32>
    %52 = arith.addf %49, %51 : vector<8x32xf32>
    %c0_31 = arith.constant 0 : index
    %c0_32 = arith.constant 0 : index
    %53 = vector.load %arg11[%c0_31, %c0_32] : memref<1x32xf32, #tpu.memory_space<vmem>>, vector<1x32xf32>
    %54 = vector.broadcast %53 : vector<1x32xf32> to vector<8x32xf32>
    %55 = arith.addf %52, %54 : vector<8x32xf32>
    %cst_33 = arith.constant 0.000000e+00 : f32
    %56 = vector.broadcast %cst_33 : f32 to vector<8x32xf32>
    %57 = arith.maximumf %55, %56 : vector<8x32xf32>
    %c0_34 = arith.constant 0 : index
    %c0_35 = arith.constant 0 : index
    %58 = vector.load %arg12[%c0_34, %c0_35] : memref<32x32xf32, #tpu.memory_space<vmem>>, vector<32x32xf32>
    %cst_36 = arith.constant dense<0.000000e+00> : vector<8x32xf32>
    %59 = tpu.matmul %57, %58, %cst_36 {dimension_numbers = #tpu.dot_dimension_numbers<[1], [0], [0], [1], [0, 0, 1, 1], [], []>} : vector<8x32xf32>, vector<32x32xf32>, vector<8x32xf32> -> vector<8x32xf32>
    %c0_37 = arith.constant 0 : index
    %c0_38 = arith.constant 0 : index
    %60 = vector.load %arg13[%c0_37, %c0_38] : memref<1x32xf32, #tpu.memory_space<vmem>>, vector<1x32xf32>
    %61 = vector.broadcast %60 : vector<1x32xf32> to vector<8x32xf32>
    %62 = arith.addf %59, %61 : vector<8x32xf32>
    %c0_39 = arith.constant 0 : index
    %c0_40 = arith.constant 0 : index
    %63 = vector.load %arg14[%c0_39, %c0_40] : memref<8x32xf32, #tpu.memory_space<vmem>>, vector<8x32xf32>
    tpu.vector_store %arg14[%c0_39, %c0_40], %62 {strides = array<i32>} : memref<8x32xf32, #tpu.memory_space<vmem>>, vector<8x32xf32>,
    return
  }
  func.func @transform_0(%arg0: i32) -> (i32, i32) {
    %c0_i32 = arith.constant 0 : i32
    %c0_i32_0 = arith.constant 0 : i32
    %c0_i32_1 = arith.constant 0 : i32
    return %c0_i32, %c0_i32_0 : i32, i32
  }
  func.func @transform_1(%arg0: i32) -> (i32, i32) {
    %c0_i32 = arith.constant 0 : i32
    %c0_i32_0 = arith.constant 0 : i32
    %c0_i32_1 = arith.constant 0 : i32
    return %c0_i32, %c0_i32_0 : i32, i32
  }
  func.func @transform_2(%arg0: i32) -> (i32, i32) {
    %c0_i32 = arith.constant 0 : i32
    %c0_i32_0 = arith.constant 0 : i32
    %c0_i32_1 = arith.constant 0 : i32
    return %c0_i32, %c0_i32_0 : i32, i32
  }
  func.func @transform_3(%arg0: i32) -> (i32, i32) {
    %c0_i32 = arith.constant 0 : i32
    %c0_i32_0 = arith.constant 0 : i32
    %c0_i32_1 = arith.constant 0 : i32
    return %c0_i32, %c0_i32_0 : i32, i32
  }
  func.func @transform_4(%arg0: i32) -> (i32, i32) {
    %c0_i32 = arith.constant 0 : i32
    %c0_i32_0 = arith.constant 0 : i32
    %c0_i32_1 = arith.constant 0 : i32
    return %c0_i32, %c0_i32_0 : i32, i32
  }
  func.func @transform_5(%arg0: i32) -> (i32, i32) {
    %c0_i32 = arith.constant 0 : i32
    %c0_i32_0 = arith.constant 0 : i32
    %c0_i32_1 = arith.constant 0 : i32
    return %c0_i32, %c0_i32_0 : i32, i32
  }
  func.func @transform_6(%arg0: i32) -> (i32, i32) {
    %c0_i32 = arith.constant 0 : i32
    %c0_i32_0 = arith.constant 0 : i32
    %c0_i32_1 = arith.constant 0 : i32
    return %c0_i32, %c0_i32_0 : i32, i32
  }
  func.func @transform_7(%arg0: i32) -> (i32, i32) {
    %c0_i32 = arith.constant 0 : i32
    %c0_i32_0 = arith.constant 0 : i32
    %c0_i32_1 = arith.constant 0 : i32
    return %c0_i32, %c0_i32_0 : i32, i32
  }
  func.func @transform_8(%arg0: i32) -> (i32, i32) {
    %c0_i32 = arith.constant 0 : i32
    %c0_i32_0 = arith.constant 0 : i32
    %c0_i32_1 = arith.constant 0 : i32
    return %c0_i32, %c0_i32_0 : i32, i32
  }
  func.func @transform_9(%arg0: i32) -> (i32, i32) {
    %c0_i32 = arith.constant 0 : i32
    %c0_i32_0 = arith.constant 0 : i32
    %c0_i32_1 = arith.constant 0 : i32
    return %c0_i32, %c0_i32_0 : i32, i32
  }
  func.func @transform_10(%arg0: i32) -> (i32, i32) {
    %c0_i32 = arith.constant 0 : i32
    %c0_i32_0 = arith.constant 0 : i32
    %c0_i32_1 = arith.constant 0 : i32
    return %c0_i32, %c0_i32_0 : i32, i32
  }
  func.func @transform_11(%arg0: i32) -> (i32, i32) {
    %c0_i32 = arith.constant 0 : i32
    %c0_i32_0 = arith.constant 0 : i32
    %c0_i32_1 = arith.constant 0 : i32
    return %c0_i32, %c0_i32_0 : i32, i32
  }
  func.func @transform_12(%arg0: i32) -> (i32, i32) {
    %c0_i32 = arith.constant 0 : i32
    %c0_i32_0 = arith.constant 0 : i32
    %c0_i32_1 = arith.constant 0 : i32
    return %c0_i32, %c0_i32_0 : i32, i32
  }
  func.func @transform_13(%arg0: i32) -> (i32, i32) {
    %c0_i32 = arith.constant 0 : i32
    %c0_i32_0 = arith.constant 0 : i32
    %c0_i32_1 = arith.constant 0 : i32
    return %c0_i32, %c0_i32_0 : i32, i32
  }
}

</mosaic_0001>

<llo_original>
// kernel: _device_forward.3
$region0: #{_device_forward.3}
  #allocation0 [shape = 'u32[]', space=smem, size = 0x4, offset = 0x4, fixed_abs, tag = 'smem constant byte address 0x4 - core index']
  #allocation1 [shape = 'u32[144,128]{1,0:T(1,128)}', space=vmem, size = 0x12000, scoped, tag = 'internal scratch']
  %s0 = inlined_call_operand.vmem [shape: f32[8,32], index: 0, kind: input, shape index: {}]
  %s1 = inlined_call_operand.vmem [shape: f32[8,320], index: 1, kind: input, shape index: {}]
  %s2 = inlined_call_operand.vmem [shape: f32[32,64], index: 2, kind: input, shape index: {}]
  %s3 = inlined_call_operand.vmem [shape: f32[1,64], index: 3, kind: input, shape index: {}]
  %s4 = inlined_call_operand.vmem [shape: f32[320,128], index: 4, kind: input, shape index: {}]
  %s5 = inlined_call_operand.vmem [shape: f32[1,128], index: 5, kind: input, shape index: {}]
  %s6 = inlined_call_operand.vmem [shape: f32[64,64], index: 6, kind: input, shape index: {}]
  %s7 = inlined_call_operand.vmem [shape: f32[1,64], index: 7, kind: input, shape index: {}]
  %s8 = inlined_call_operand.vmem [shape: f32[32,32], index: 8, kind: input, shape index: {}]
  %s9 = inlined_call_operand.vmem [shape: f32[64,32], index: 9, kind: input, shape index: {}]
  %s10 = inlined_call_operand.vmem [shape: f32[1,32], index: 10, kind: input, shape index: {}]
  %s11 = inlined_call_operand.vmem [shape: f32[32,32], index: 11, kind: input, shape index: {}]
  %s12 = inlined_call_operand.vmem [shape: f32[1,32], index: 12, kind: input, shape index: {}]
  %s13 = inlined_call_operand.hbm [shape: f32[8,32], index: 13, kind: output, shape index: {}]
  %s14 = sld [smem:[#allocation0]]
  $region62: #{_device_forward.3} parent=0
    _
  %s16 = ssub.s32 1, %s14
  %s17 = scalar_select 0, %s16, %s14
  $region1: #{_device_forward.3} parent=0
    #allocation2 [shape = 'u8[4096]{0}', space=vmem, size = 0x1000, scoped, tag = 'output window, operand 0, single buffered']
    #allocation3 [shape = 's32[1]{0}', space=sflag, size = 0x4, scoped, tag = 'scoped memory for _device_forward.3']
    %18 = vsyncpa [#allocation3], 0
    // Predicated region
    $region2: #{_device_forward.3} parent=1 // pred_check
      _
    $region3: #{_device_forward.3} parent=1 // pred_check_branch
      %20 = sbr.rel (0) target = $region5
    $region4: #{_device_forward.3} parent=1 // pred_region
      _
    $region5: #{_device_forward.3} parent=1 // pred_fallthru
      _
    // Predicated region
    $region6: #{_device_forward.3} parent=1 // pred_check
      _
    $region7: #{_device_forward.3} parent=1 // pred_check_branch
      %22 = sbr.rel (0) target = $region9
    $region8: #{_device_forward.3} parent=1 // pred_region
      _
    $region9: #{_device_forward.3} parent=1 // pred_fallthru
      _
    // Predicated region
    $region10: #{_device_forward.3} parent=1 // pred_check
      _
    $region11: #{_device_forward.3} parent=1 // pred_check_branch
      %24 = sbr.rel (0) target = $region13
    $region12: #{_device_forward.3} parent=1 // pred_region
      _
    $region13: #{_device_forward.3} parent=1 // pred_fallthru
      _
    // Predicated region
    $region14: #{_device_forward.3} parent=1 // pred_check
      _
    $region15: #{_device_forward.3} parent=1 // pred_check_branch
      %26 = sbr.rel (0) target = $region17
    $region16: #{_device_forward.3} parent=1 // pred_region
      _
    $region17: #{_device_forward.3} parent=1 // pred_fallthru
      _
    // Predicated region
    $region18: #{_device_forward.3} parent=1 // pred_check
      _
    $region19: #{_device_forward.3} parent=1 // pred_check_branch
      %28 = sbr.rel (0) target = $region21
    $region20: #{_device_forward.3} parent=1 // pred_region
      _
    $region21: #{_device_forward.3} parent=1 // pred_fallthru
      _
    // Predicated region
    $region22: #{_device_forward.3} parent=1 // pred_check
      _
    $region23: #{_device_forward.3} parent=1 // pred_check_branch
      %30 = sbr.rel (0) target = $region25
    $region24: #{_device_forward.3} parent=1 // pred_region
      _
    $region25: #{_device_forward.3} parent=1 // pred_fallthru
      _
    // Predicated region
    $region26: #{_device_forward.3} parent=1 // pred_check
      _
    $region27: #{_device_forward.3} parent=1 // pred_check_branch
      %32 = sbr.rel (0) target = $region29
    $region28: #{_device_forward.3} parent=1 // pred_region
      _
    $region29: #{_device_forward.3} parent=1 // pred_fallthru
      _
    // Predicated region
    $region30: #{_device_forward.3} parent=1 // pred_check
      _
    $region31: #{_device_forward.3} parent=1 // pred_check_branch
      %34 = sbr.rel (0) target = $region33
    $region32: #{_device_forward.3} parent=1 // pred_region
      _
    $region33: #{_device_forward.3} parent=1 // pred_fallthru
      _
    // Predicated region
    $region34: #{_device_forward.3} parent=1 // pred_check
      _
    $region35: #{_device_forward.3} parent=1 // pred_check_branch
      %36 = sbr.rel (0) target = $region37
    $region36: #{_device_forward.3} parent=1 // pred_region
      _
    $region37: #{_device_forward.3} parent=1 // pred_fallthru
      _
    // Predicated region
    $region38: #{_device_forward.3} parent=1 // pred_check
      _
    $region39: #{_device_forward.3} parent=1 // pred_check_branch
      %38 = sbr.rel (0) target = $region41
    $region40: #{_device_forward.3} parent=1 // pred_region
      _
    $region41: #{_device_forward.3} parent=1 // pred_fallthru
      _
    // Predicated region
    $region42: #{_device_forward.3} parent=1 // pred_check
      _
    $region43: #{_device_forward.3} parent=1 // pred_check_branch
      %40 = sbr.rel (0) target = $region45
    $region44: #{_device_forward.3} parent=1 // pred_region
      _
    $region45: #{_device_forward.3} parent=1 // pred_fallthru
      _
    // Predicated region
    $region46: #{_device_forward.3} parent=1 // pred_check
      _
    $region47: #{_device_forward.3} parent=1 // pred_check_branch
      %42 = sbr.rel (0) target = $region49
    $region48: #{_device_forward.3} parent=1 // pred_region
      _
    $region49: #{_device_forward.3} parent=1 // pred_fallthru
      _
    // Predicated region
    $region50: #{_device_forward.3} parent=1 // pred_check
      _
    $region51: #{_device_forward.3} parent=1 // pred_check_branch
      %44 = sbr.rel (0) target = $region53
    $region52: #{_device_forward.3} parent=1 // pred_region
      _
    $region53: #{_device_forward.3} parent=1 // pred_fallthru
      _
    %v45 = vld [vmem:[%s0] sm:$0xff]
    %v46 = vld [vmem:[%s1] sm:$0xff]
    %v47 = vld [vmem:[%s1 + $0x8] sm:$0xff]
    %v48 = vld [vmem:[%s1 + $0x10] sm:$0xff]
    %v49 = vld [vmem:[%s2] sm:$0xff]
    %v50 = vld [vmem:[%s2 + $0x8] sm:$0xff]
    %v51 = vld [vmem:[%s2 + $0x10] sm:$0xff]
    %v52 = vld [vmem:[%s2 + $0x18] sm:$0xff]
    %v53 = vld [vmem:[%s3] sm:$0x1]
    %v55 = vlaneseq
    %v56 = vshrl.u32 %v55, 7
    %v57 = vsub.s32 0, %v56
    %v58 = vrot.slane %v53, %v57
    %vm60 = vcmask 261120
    %v62 = vsel %vm60, %v45, 0
    %64 = vmatprep.subr.mxu0 0.0
    %65 = vmatpush1.msra.mxu0 %v49
    %66 = vmatprep.subr.mxu0 0.0
    %67 = vmatpush1.msra.mxu0 %v50
    %68 = vmatprep.subr.mxu0 0.0
    %69 = vmatpush1.msra.mxu0 %v51
    %70 = vmatprep.subr.mxu0 0.0
    %71 = vmatpush1.msra.mxu0 %v52
    %72 = vmatprep.subr.mxu0 0.0
    %73 = vmatpush1.msra.mxu0 0.0
    %74 = vmatprep.subr.mxu0 0.0
    %75 = vmatpush1.msra.mxu0 0.0
    %76 = vmatprep.subr.mxu0 0.0
    %77 = vmatpush1.msra.mxu0 0.0
    %78 = vmatprep.subr.mxu0 0.0
    %79 = vmatpush1.msra.mxu0 0.0
    %80 = vmatprep.subr.mxu0 0.0
    %81 = vmatpush1.msra.mxu0 0.0
    %82 = vmatprep.subr.mxu0 0.0
    %83 = vmatpush1.msra.mxu0 0.0
    %84 = vmatprep.subr.mxu0 0.0
    %85 = vmatpush1.msra.mxu0 0.0
    %86 = vmatprep.subr.mxu0 0.0
    %87 = vmatpush1.msra.mxu0 0.0
    %88 = vmatprep.subr.mxu0 0.0
    %89 = vmatpush1.msra.mxu0 0.0
    %90 = vmatprep.subr.mxu0 0.0
    %91 = vmatpush1.msra.mxu0 0.0
    %92 = vmatprep.subr.mxu0 0.0
    %93 = vmatpush1.msra.mxu0 0.0
    %94 = vmatprep.subr.mxu0 0.0
    %95 = vmatpush1.msra.mxu0 0.0
    %96 = vmatprep.subr.mxu0 0.0
    %97 = vmatpush1.msra.mxu0 0.0
    %98 = vmatprep.subr.mxu0 0.0
    %99 = vmatpush1.msra.mxu0 0.0
    %100 = vmatprep.subr.mxu0 0.0
    %101 = vmatpush1.msra.mxu0 0.0
    %102 = vmatprep.subr.mxu0 0.0
    %103 = vmatpush1.msra.mxu0 0.0
    %104 = vmatprep.subr.mxu0 0.0
    %105 = vmatpush1.msra.mxu0 0.0
    %106 = vmatprep.subr.mxu0 0.0
    %107 = vmatpush1.msra.mxu0 0.0
    %108 = vmatprep.subr.mxu0 0.0
    %109 = vmatpush1.msra.mxu0 0.0
    %110 = vmatprep.subr.mxu0 0.0
    %111 = vmatpush1.msra.mxu0 0.0
    %112 = vmatprep.subr.mxu0 0.0
    %113 = vmatpush1.msra.mxu0 0.0
    %114 = vmatprep.subr.mxu0 0.0
    %115 = vmatpush1.msra.mxu0 0.0
    %116 = vmatprep.subr.mxu0 0.0
    %117 = vmatpush1.msra.mxu0 0.0
    %118 = vmatprep.subr.mxu0 0.0
    %119 = vmatpush1.msra.mxu0 0.0
    %120 = vmatprep.subr.mxu0 0.0
    %121 = vmatpush1.msra.mxu0 0.0
    %122 = vmatprep.subr.mxu0 0.0
    %123 = vmatpush1.msra.mxu0 0.0
    %124 = vmatprep.subr.mxu0 0.0
    %125 = vmatpush1.msra.mxu0 0.0
    %126 = vmatprep.subr.mxu0 0.0
    %127 = vmatpush1.msra.mxu0 0.0
    %128 = vmatprep.mubr.f32.mxu0 0.0
    %129 = vmatmul.mubr.f32.gmra.mrb[0].mxu0 %v62
    %v130 = vpop.f32.mrb[0].mxu0
    %v131 = vadd.f32 %v58, %v130
    %v132 = vpop.f32.mrb[0].mxu0
    %133 = vdwg.mxu0
    %v134 = vld [vmem:[%s4] sm:$0xff]
    %v135 = vld [vmem:[%s4 + $0x8] sm:$0xff]
    %v136 = vld [vmem:[%s4 + $0x10] sm:$0xff]
    %v137 = vld [vmem:[%s4 + $0x18] sm:$0xff]
    %v138 = vld [vmem:[%s4 + $0x20] sm:$0xff]
    %v139 = vld [vmem:[%s4 + $0x28] sm:$0xff]
    %v140 = vld [vmem:[%s4 + $0x30] sm:$0xff]
    %v141 = vld [vmem:[%s4 + $0x38] sm:$0xff]
    %v142 = vld [vmem:[%s4 + $0x40] sm:$0xff]
    %v143 = vld [vmem:[%s4 + $0x48] sm:$0xff]
    %v144 = vld [vmem:[%s4 + $0x50] sm:$0xff]
    %v145 = vld [vmem:[%s4 + $0x58] sm:$0xff]
    %v146 = vld [vmem:[%s4 + $0x60] sm:$0xff]
    %v147 = vld [vmem:[%s4 + $0x68] sm:$0xff]
    %v148 = vld [vmem:[%s4 + $0x70] sm:$0xff]
    %v149 = vld [vmem:[%s4 + $0x78] sm:$0xff]
    %v150 = vld [vmem:[%s4 + $0x80] sm:$0xff]
    %v151 = vld [vmem:[%s4 + $0x88] sm:$0xff]
    %v152 = vld [vmem:[%s4 + $0x90] sm:$0xff]
    %v153 = vld [vmem:[%s4 + $0x98] sm:$0xff]
    %v154 = vld [vmem:[%s4 + $0xa0] sm:$0xff]
    %v155 = vld [vmem:[%s4 + $0xa8] sm:$0xff]
    %v156 = vld [vmem:[%s4 + $0xb0] sm:$0xff]
    %v157 = vld [vmem:[%s4 + $0xb8] sm:$0xff]
    %v158 = vld [vmem:[%s4 + $0xc0] sm:$0xff]
    %v159 = vld [vmem:[%s4 + $0xc8] sm:$0xff]
    %v160 = vld [vmem:[%s4 + $0xd0] sm:$0xff]
    %v161 = vld [vmem:[%s4 + $0xd8] sm:$0xff]
    %v162 = vld [vmem:[%s4 + $0xe0] sm:$0xff]
    %v163 = vld [vmem:[%s4 + $0xe8] sm:$0xff]
    %v164 = vld [vmem:[%s4 + $0xf0] sm:$0xff]
    %v165 = vld [vmem:[%s4 + $0xf8] sm:$0xff]
    %v166 = vld [vmem:[%s4 + $0x100] sm:$0xff]
    %v167 = vld [vmem:[%s4 + $0x108] sm:$0xff]
    %v168 = vld [vmem:[%s4 + $0x110] sm:$0xff]
    %v169 = vld [vmem:[%s4 + $0x118] sm:$0xff]
    %v170 = vld [vmem:[%s4 + $0x120] sm:$0xff]
    %v171 = vld [vmem:[%s4 + $0x128] sm:$0xff]
    %v172 = vld [vmem:[%s4 + $0x130] sm:$0xff]
    %v173 = vld [vmem:[%s4 + $0x138] sm:$0xff]
    %v174 = vld [vmem:[%s5] sm:$0x1]
    %v176 = vlaneseq
    %v177 = vshrl.u32 %v176, 7
    %v178 = vsub.s32 0, %v177
    %v179 = vrot.slane %v174, %v178
    %vm181 = vcmask 523264
    %v183 = vsel %vm181, %v48, 0
    %185 = vmatprep.subr.mxu0 0.0
    %186 = vmatpush1.msra.mxu0 %v134
    %187 = vmatprep.subr.mxu0 0.0
    %188 = vmatpush1.msra.mxu0 %v135
    %189 = vmatprep.subr.mxu0 0.0
    %190 = vmatpush1.msra.mxu0 %v136
    %191 = vmatprep.subr.mxu0 0.0
    %192 = vmatpush1.msra.mxu0 %v137
    %193 = vmatprep.subr.mxu0 0.0
    %194 = vmatpush1.msra.mxu0 %v138
    %195 = vmatprep.subr.mxu0 0.0
    %196 = vmatpush1.msra.mxu0 %v139
    %197 = vmatprep.subr.mxu0 0.0
    %198 = vmatpush1.msra.mxu0 %v140
    %199 = vmatprep.subr.mxu0 0.0
    %200 = vmatpush1.msra.mxu0 %v141
    %201 = vmatprep.subr.mxu0 0.0
    %202 = vmatpush1.msra.mxu0 %v142
    %203 = vmatprep.subr.mxu0 0.0
    %204 = vmatpush1.msra.mxu0 %v143
    %205 = vmatprep.subr.mxu0 0.0
    %206 = vmatpush1.msra.mxu0 %v144
    %207 = vmatprep.subr.mxu0 0.0
    %208 = vmatpush1.msra.mxu0 %v145
    %209 = vmatprep.subr.mxu0 0.0
    %210 = vmatpush1.msra.mxu0 %v146
    %211 = vmatprep.subr.mxu0 0.0
    %212 = vmatpush1.msra.mxu0 %v147
    %213 = vmatprep.subr.mxu0 0.0
    %214 = vmatpush1.msra.mxu0 %v148
    %215 = vmatprep.subr.mxu0 0.0
    %216 = vmatpush1.msra.mxu0 %v149
    %217 = vmatprep.subr.mxu0 0.0
    %218 = vmatpush1.msra.mxu0 %v150
    %219 = vmatprep.subr.mxu0 0.0
    %220 = vmatpush1.msra.mxu0 %v151
    %221 = vmatprep.subr.mxu0 0.0
    %222 = vmatpush1.msra.mxu0 %v152
    %223 = vmatprep.subr.mxu0 0.0
    %224 = vmatpush1.msra.mxu0 %v153
    %225 = vmatprep.subr.mxu0 0.0
    %226 = vmatpush1.msra.mxu0 %v154
    %227 = vmatprep.subr.mxu0 0.0
    %228 = vmatpush1.msra.mxu0 %v155
    %229 = vmatprep.subr.mxu0 0.0
    %230 = vmatpush1.msra.mxu0 %v156
    %231 = vmatprep.subr.mxu0 0.0
    %232 = vmatpush1.msra.mxu0 %v157
    %233 = vmatprep.subr.mxu0 0.0
    %234 = vmatpush1.msra.mxu0 %v158
    %235 = vmatprep.subr.mxu0 0.0
    %236 = vmatpush1.msra.mxu0 %v159
    %237 = vmatprep.subr.mxu0 0.0
    %238 = vmatpush1.msra.mxu0 %v160
    %239 = vmatprep.subr.mxu0 0.0
    %240 = vmatpush1.msra.mxu0 %v161
    %241 = vmatprep.subr.mxu0 0.0
    %242 = vmatpush1.msra.mxu0 %v162
    %243 = vmatprep.subr.mxu0 0.0
    %244 = vmatpush1.msra.mxu0 %v163
    %245 = vmatprep.subr.mxu0 0.0
    %246 = vmatpush1.msra.mxu0 %v164
    %247 = vmatprep.subr.mxu0 0.0
    %248 = vmatpush1.msra.mxu0 %v165
    %249 = vmatprep.mubr.f32.mxu0 %v47
    %250 = vmatmul.mubr.f32.gmra.mrb[0].mxu0 %v46
    %v251 = vpop.f32.mrb[0].mxu0
    %v252 = vadd.f32 %v179, %v251
    %v253 = vpop.f32.mrb[0].mxu0
    %254 = vdwg.mxu0
    %255 = vmatprep.subr.mxu0 0.0
    %256 = vmatpush1.msra.mxu0 %v166
    %257 = vmatprep.subr.mxu0 0.0
    %258 = vmatpush1.msra.mxu0 %v167
    %259 = vmatprep.subr.mxu0 0.0
    %260 = vmatpush1.msra.mxu0 %v168
    %261 = vmatprep.subr.mxu0 0.0
    %262 = vmatpush1.msra.mxu0 %v169
    %263 = vmatprep.subr.mxu0 0.0
    %264 = vmatpush1.msra.mxu0 %v170
    %265 = vmatprep.subr.mxu0 0.0
    %266 = vmatpush1.msra.mxu0 %v171
    %267 = vmatprep.subr.mxu0 0.0
    %268 = vmatpush1.msra.mxu0 %v172
    %269 = vmatprep.subr.mxu0 0.0
    %270 = vmatpush1.msra.mxu0 %v173
    %271 = vmatprep.subr.mxu0 0.0
    %272 = vmatpush1.msra.mxu0 0.0
    %273 = vmatprep.subr.mxu0 0.0
    %274 = vmatpush1.msra.mxu0 0.0
    %275 = vmatprep.subr.mxu0 0.0
    %276 = vmatpush1.msra.mxu0 0.0
    %277 = vmatprep.subr.mxu0 0.0
    %278 = vmatpush1.msra.mxu0 0.0
    %279 = vmatprep.subr.mxu0 0.0
    %280 = vmatpush1.msra.mxu0 0.0
    %281 = vmatprep.subr.mxu0 0.0
    %282 = vmatpush1.msra.mxu0 0.0
    %283 = vmatprep.subr.mxu0 0.0
    %284 = vmatpush1.msra.mxu0 0.0
    %285 = vmatprep.subr.mxu0 0.0
    %286 = vmatpush1.msra.mxu0 0.0
    %287 = vmatprep.subr.mxu0 0.0
    %288 = vmatpush1.msra.mxu0 0.0
    %289 = vmatprep.subr.mxu0 0.0
    %290 = vmatpush1.msra.mxu0 0.0
    %291 = vmatprep.subr.mxu0 0.0
    %292 = vmatpush1.msra.mxu0 0.0
    %293 = vmatprep.subr.mxu0 0.0
    %294 = vmatpush1.msra.mxu0 0.0
    %295 = vmatprep.subr.mxu0 0.0
    %296 = vmatpush1.msra.mxu0 0.0
    %297 = vmatprep.subr.mxu0 0.0
    %298 = vmatpush1.msra.mxu0 0.0
    %299 = vmatprep.subr.mxu0 0.0
    %300 = vmatpush1.msra.mxu0 0.0
    %301 = vmatprep.subr.mxu0 0.0
    %302 = vmatpush1.msra.mxu0 0.0
    %303 = vmatprep.subr.mxu0 0.0
    %304 = vmatpush1.msra.mxu0 0.0
    %305 = vmatprep.subr.mxu0 0.0
    %306 = vmatpush1.msra.mxu0 0.0
    %307 = vmatprep.subr.mxu0 0.0
    %308 = vmatpush1.msra.mxu0 0.0
    %309 = vmatprep.subr.mxu0 0.0
    %310 = vmatpush1.msra.mxu0 0.0
    %311 = vmatprep.subr.mxu0 0.0
    %312 = vmatpush1.msra.mxu0 0.0
    %313 = vmatprep.subr.mxu0 0.0
    %314 = vmatpush1.msra.mxu0 0.0
    %315 = vmatprep.subr.mxu0 0.0
    %316 = vmatpush1.msra.mxu0 0.0
    %317 = vmatprep.subr.mxu0 0.0
    %318 = vmatpush1.msra.mxu0 0.0
    %319 = vmatprep.mubr.f32.mxu0 0.0
    %320 = vmatmul.mubr.f32.gmra.mrb[0].mxu0 %v183
    %v321 = vpop.f32.mrb[0].mxu0
    %v322 = vadd.f32 %v252, %v321
    %v323 = vpop.f32.mrb[0].mxu0
    %324 = vdwg.mxu0
    %v326 = vsel %vm60, %v131, 0
    %v329 = vsel %vm60, %v322, 0
    %331 = vmatprep.subr.mxu0 0.0
    %332 = vmatpush1.xpose.msra.mxu0 %v329
    %333 = vmatprep.subr.mxu0 0.0
    %334 = vmatpush1.xpose.msra.mxu0 0.0
    %335 = vmatprep.subr.mxu0 0.0
    %336 = vmatpush1.xpose.msra.mxu0 0.0
    %337 = vmatprep.subr.mxu0 0.0
    %338 = vmatpush1.xpose.msra.mxu0 0.0
    %339 = vmatprep.subr.mxu0 0.0
    %340 = vmatpush1.xpose.msra.mxu0 0.0
    %341 = vmatprep.subr.mxu0 0.0
    %342 = vmatpush1.xpose.msra.mxu0 0.0
    %343 = vmatprep.subr.mxu0 0.0
    %344 = vmatpush1.xpose.msra.mxu0 0.0
    %345 = vmatprep.subr.mxu0 0.0
    %346 = vmatpush1.xpose.msra.mxu0 0.0
    %347 = vmatprep.subr.mxu0 0.0
    %348 = vmatpush1.xpose.msra.mxu0 0.0
    %349 = vmatprep.subr.mxu0 0.0
    %350 = vmatpush1.xpose.msra.mxu0 0.0
    %351 = vmatprep.subr.mxu0 0.0
    %352 = vmatpush1.xpose.msra.mxu0 0.0
    %353 = vmatprep.subr.mxu0 0.0
    %354 = vmatpush1.xpose.msra.mxu0 0.0
    %355 = vmatprep.subr.mxu0 0.0
    %356 = vmatpush1.xpose.msra.mxu0 0.0
    %357 = vmatprep.subr.mxu0 0.0
    %358 = vmatpush1.xpose.msra.mxu0 0.0
    %359 = vmatprep.subr.mxu0 0.0
    %360 = vmatpush1.xpose.msra.mxu0 0.0
    %361 = vmatprep.subr.mxu0 0.0
    %362 = vmatpush1.xpose.msra.mxu0 0.0
    %363 = vmatprep.subr.mxu0 0.0
    %364 = vmatpush1.xpose.msra.mxu0 0.0
    %365 = vmatprep.subr.mxu0 0.0
    %366 = vmatpush1.xpose.msra.mxu0 0.0
    %367 = vmatprep.subr.mxu0 0.0
    %368 = vmatpush1.xpose.msra.mxu0 0.0
    %369 = vmatprep.subr.mxu0 0.0
    %370 = vmatpush1.xpose.msra.mxu0 0.0
    %371 = vmatprep.subr.mxu0 0.0
    %372 = vmatpush1.xpose.msra.mxu0 0.0
    %373 = vmatprep.subr.mxu0 0.0
    %374 = vmatpush1.xpose.msra.mxu0 0.0
    %375 = vmatprep.subr.mxu0 0.0
    %376 = vmatpush1.xpose.msra.mxu0 0.0
    %377 = vmatprep.subr.mxu0 0.0
    %378 = vmatpush1.xpose.msra.mxu0 0.0
    %379 = vmatprep.subr.mxu0 0.0
    %380 = vmatpush1.xpose.msra.mxu0 0.0
    %381 = vmatprep.subr.mxu0 0.0
    %382 = vmatpush1.xpose.msra.mxu0 0.0
    %383 = vmatprep.subr.mxu0 0.0
    %384 = vmatpush1.xpose.msra.mxu0 0.0
    %385 = vmatprep.subr.mxu0 0.0
    %386 = vmatpush1.xpose.msra.mxu0 0.0
    %387 = vmatprep.subr.mxu0 0.0
    %388 = vmatpush1.xpose.msra.mxu0 0.0
    %389 = vmatprep.subr.mxu0 0.0
    %390 = vmatpush1.xpose.msra.mxu0 0.0
    %391 = vmatprep.subr.mxu0 0.0
    %392 = vmatpush1.xpose.msra.mxu0 0.0
    %393 = vmatprep.subr.mxu0 0.0
    %394 = vmatpush1.xpose.msra.mxu0 0.0
    %395 = vmatprep.mubr.f32.mxu0 0.0
    %396 = vmatmul.mubr.f32.gmra.mrb[0].mxu0 %v326
    %v397 = vpop.f32.mrb[0].mxu0
    %v398 = vadd.f32 0.0, %v397
    %v399 = vpop.f32.mrb[0].mxu0
    %400 = vdwg.mxu0
    %vm401 = vcmask 64512
    %v402 = vsel %vm401, %v398, -inf
    %403 = vmax.xlane.f32.xlu0 %v402
    %v404 = vpop.xlane.xlu0 %403
    %v405 = vsub.f32 %v398, %v404
    %v406 = vmul.f32 %v405, 1.442695
    %v407 = vpow.pop %v406
    %v408 = vsel %vm401, %v407, 0.0
    %409 = vadd.xlane.f32.xlu0 %v408
    %v410 = vpop.xlane.xlu0 %409
    %v411 = vrcp.pop %v410
    %v412 = vmul.f32 %v407, %v411
    %413 = vrot.lane.b32.xlu0 %v322, 64
    %v414 = vpop.permute.xlu0 %413
    %v417 = vsel %vm401, %v412, 0
    %419 = vmatprep.subr.mxu0 0.0
    %420 = vmatpush1.msra.mxu0 %v414
    %421 = vmatprep.subr.mxu0 0.0
    %422 = vmatpush1.msra.mxu0 0.0
    %423 = vmatprep.subr.mxu0 0.0
    %424 = vmatpush1.msra.mxu0 0.0
    %425 = vmatprep.subr.mxu0 0.0
    %426 = vmatpush1.msra.mxu0 0.0
    %427 = vmatprep.subr.mxu0 0.0
    %428 = vmatpush1.msra.mxu0 0.0
    %429 = vmatprep.subr.mxu0 0.0
    %430 = vmatpush1.msra.mxu0 0.0
    %431 = vmatprep.subr.mxu0 0.0
    %432 = vmatpush1.msra.mxu0 0.0
    %433 = vmatprep.subr.mxu0 0.0
    %434 = vmatpush1.msra.mxu0 0.0
    %435 = vmatprep.subr.mxu0 0.0
    %436 = vmatpush1.msra.mxu0 0.0
    %437 = vmatprep.subr.mxu0 0.0
    %438 = vmatpush1.msra.mxu0 0.0
    %439 = vmatprep.subr.mxu0 0.0
    %440 = vmatpush1.msra.mxu0 0.0
    %441 = vmatprep.subr.mxu0 0.0
    %442 = vmatpush1.msra.mxu0 0.0
    %443 = vmatprep.subr.mxu0 0.0
    %444 = vmatpush1.msra.mxu0 0.0
    %445 = vmatprep.subr.mxu0 0.0
    %446 = vmatpush1.msra.mxu0 0.0
    %447 = vmatprep.subr.mxu0 0.0
    %448 = vmatpush1.msra.mxu0 0.0
    %449 = vmatprep.subr.mxu0 0.0
    %450 = vmatpush1.msra.mxu0 0.0
    %451 = vmatprep.subr.mxu0 0.0
    %452 = vmatpush1.msra.mxu0 0.0
    %453 = vmatprep.subr.mxu0 0.0
    %454 = vmatpush1.msra.mxu0 0.0
    %455 = vmatprep.subr.mxu0 0.0
    %456 = vmatpush1.msra.mxu0 0.0
    %457 = vmatprep.subr.mxu0 0.0
    %458 = vmatpush1.msra.mxu0 0.0
    %459 = vmatprep.subr.mxu0 0.0
    %460 = vmatpush1.msra.mxu0 0.0
    %461 = vmatprep.subr.mxu0 0.0
    %462 = vmatpush1.msra.mxu0 0.0
    %463 = vmatprep.subr.mxu0 0.0
    %464 = vmatpush1.msra.mxu0 0.0
    %465 = vmatprep.subr.mxu0 0.0
    %466 = vmatpush1.msra.mxu0 0.0
    %467 = vmatprep.subr.mxu0 0.0
    %468 = vmatpush1.msra.mxu0 0.0
    %469 = vmatprep.subr.mxu0 0.0
    %470 = vmatpush1.msra.mxu0 0.0
    %471 = vmatprep.subr.mxu0 0.0
    %472 = vmatpush1.msra.mxu0 0.0
    %473 = vmatprep.subr.mxu0 0.0
    %474 = vmatpush1.msra.mxu0 0.0
    %475 = vmatprep.subr.mxu0 0.0
    %476 = vmatpush1.msra.mxu0 0.0
    %477 = vmatprep.subr.mxu0 0.0
    %478 = vmatpush1.msra.mxu0 0.0
    %479 = vmatprep.subr.mxu0 0.0
    %480 = vmatpush1.msra.mxu0 0.0
    %481 = vmatprep.subr.mxu0 0.0
    %482 = vmatpush1.msra.mxu0 0.0
    %483 = vmatprep.mubr.f32.mxu0 0.0
    %484 = vmatmul.mubr.f32.gmra.mrb[0].mxu0 %v417
    %v485 = vpop.f32.mrb[0].mxu0
    %v486 = vadd.f32 0.0, %v485
    %v487 = vpop.f32.mrb[0].mxu0
    %488 = vdwg.mxu0
    %489 = vrot.lane.b32.xlu0 %v131, 96
    %v490 = vpop.permute.xlu0 %489
    %491 = vrot.lane.b32.xlu0 %v322, 96
    %v492 = vpop.permute.xlu0 %491
    %v493 = vsel %vm60, %v490, 0
    %v495 = vsel %vm60, %v492, 0
    %497 = vmatprep.subr.mxu0 0.0
    %498 = vmatpush1.xpose.msra.mxu0 %v495
    %499 = vmatprep.subr.mxu0 0.0
    %500 = vmatpush1.xpose.msra.mxu0 0.0
    %501 = vmatprep.subr.mxu0 0.0
    %502 = vmatpush1.xpose.msra.mxu0 0.0
    %503 = vmatprep.subr.mxu0 0.0
    %504 = vmatpush1.xpose.msra.mxu0 0.0
    %505 = vmatprep.subr.mxu0 0.0
    %506 = vmatpush1.xpose.msra.mxu0 0.0
    %507 = vmatprep.subr.mxu0 0.0
    %508 = vmatpush1.xpose.msra.mxu0 0.0
    %509 = vmatprep.subr.mxu0 0.0
    %510 = vmatpush1.xpose.msra.mxu0 0.0
    %511 = vmatprep.subr.mxu0 0.0
    %512 = vmatpush1.xpose.msra.mxu0 0.0
    %513 = vmatprep.subr.mxu0 0.0
    %514 = vmatpush1.xpose.msra.mxu0 0.0
    %515 = vmatprep.subr.mxu0 0.0
    %516 = vmatpush1.xpose.msra.mxu0 0.0
    %517 = vmatprep.subr.mxu0 0.0
    %518 = vmatpush1.xpose.msra.mxu0 0.0
    %519 = vmatprep.subr.mxu0 0.0
    %520 = vmatpush1.xpose.msra.mxu0 0.0
    %521 = vmatprep.subr.mxu0 0.0
    %522 = vmatpush1.xpose.msra.mxu0 0.0
    %523 = vmatprep.subr.mxu0 0.0
    %524 = vmatpush1.xpose.msra.mxu0 0.0
    %525 = vmatprep.subr.mxu0 0.0
    %526 = vmatpush1.xpose.msra.mxu0 0.0
    %527 = vmatprep.subr.mxu0 0.0
    %528 = vmatpush1.xpose.msra.mxu0 0.0
    %529 = vmatprep.subr.mxu0 0.0
    %530 = vmatpush1.xpose.msra.mxu0 0.0
    %531 = vmatprep.subr.mxu0 0.0
    %532 = vmatpush1.xpose.msra.mxu0 0.0
    %533 = vmatprep.subr.mxu0 0.0
    %534 = vmatpush1.xpose.msra.mxu0 0.0
    %535 = vmatprep.subr.mxu0 0.0
    %536 = vmatpush1.xpose.msra.mxu0 0.0
    %537 = vmatprep.subr.mxu0 0.0
    %538 = vmatpush1.xpose.msra.mxu0 0.0
    %539 = vmatprep.subr.mxu0 0.0
    %540 = vmatpush1.xpose.msra.mxu0 0.0
    %541 = vmatprep.subr.mxu0 0.0
    %542 = vmatpush1.xpose.msra.mxu0 0.0
    %543 = vmatprep.subr.mxu0 0.0
    %544 = vmatpush1.xpose.msra.mxu0 0.0
    %545 = vmatprep.subr.mxu0 0.0
    %546 = vmatpush1.xpose.msra.mxu0 0.0
    %547 = vmatprep.subr.mxu0 0.0
    %548 = vmatpush1.xpose.msra.mxu0 0.0
    %549 = vmatprep.subr.mxu0 0.0
    %550 = vmatpush1.xpose.msra.mxu0 0.0
    %551 = vmatprep.subr.mxu0 0.0
    %552 = vmatpush1.xpose.msra.mxu0 0.0
    %553 = vmatprep.subr.mxu0 0.0
    %554 = vmatpush1.xpose.msra.mxu0 0.0
    %555 = vmatprep.subr.mxu0 0.0
    %556 = vmatpush1.xpose.msra.mxu0 0.0
    %557 = vmatprep.subr.mxu0 0.0
    %558 = vmatpush1.xpose.msra.mxu0 0.0
    %559 = vmatprep.subr.mxu0 0.0
    %560 = vmatpush1.xpose.msra.mxu0 0.0
    %561 = vmatprep.mubr.f32.mxu0 0.0
    %562 = vmatmul.mubr.f32.gmra.mrb[0].mxu0 %v493
    %v563 = vpop.f32.mrb[0].mxu0
    %v564 = vadd.f32 0.0, %v563
    %v565 = vpop.f32.mrb[0].mxu0
    %566 = vdwg.mxu0
    %v567 = vsel %vm401, %v564, -inf
    %568 = vmax.xlane.f32.xlu0 %v567
    %v569 = vpop.xlane.xlu0 %568
    %v570 = vsub.f32 %v564, %v569
    %v571 = vmul.f32 %v570, 1.442695
    %v572 = vpow.pop %v571
    %v573 = vsel %vm401, %v572, 0.0
    %574 = vadd.xlane.f32.xlu0 %v573
    %v575 = vpop.xlane.xlu0 %574
    %v576 = vrcp.pop %v575
    %v577 = vmul.f32 %v572, %v576
    %578 = vrot.lane.b32.xlu0 %v322, 32
    %v579 = vpop.permute.xlu0 %578
    %v582 = vsel %vm401, %v577, 0
    %584 = vmatprep.subr.mxu0 0.0
    %585 = vmatpush1.msra.mxu0 %v579
    %586 = vmatprep.subr.mxu0 0.0
    %587 = vmatpush1.msra.mxu0 0.0
    %588 = vmatprep.subr.mxu0 0.0
    %589 = vmatpush1.msra.mxu0 0.0
    %590 = vmatprep.subr.mxu0 0.0
    %591 = vmatpush1.msra.mxu0 0.0
    %592 = vmatprep.subr.mxu0 0.0
    %593 = vmatpush1.msra.mxu0 0.0
    %594 = vmatprep.subr.mxu0 0.0
    %595 = vmatpush1.msra.mxu0 0.0
    %596 = vmatprep.subr.mxu0 0.0
    %597 = vmatpush1.msra.mxu0 0.0
    %598 = vmatprep.subr.mxu0 0.0
    %599 = vmatpush1.msra.mxu0 0.0
    %600 = vmatprep.subr.mxu0 0.0
    %601 = vmatpush1.msra.mxu0 0.0
    %602 = vmatprep.subr.mxu0 0.0
    %603 = vmatpush1.msra.mxu0 0.0
    %604 = vmatprep.subr.mxu0 0.0
    %605 = vmatpush1.msra.mxu0 0.0
    %606 = vmatprep.subr.mxu0 0.0
    %607 = vmatpush1.msra.mxu0 0.0
    %608 = vmatprep.subr.mxu0 0.0
    %609 = vmatpush1.msra.mxu0 0.0
    %610 = vmatprep.subr.mxu0 0.0
    %611 = vmatpush1.msra.mxu0 0.0
    %612 = vmatprep.subr.mxu0 0.0
    %613 = vmatpush1.msra.mxu0 0.0
    %614 = vmatprep.subr.mxu0 0.0
    %615 = vmatpush1.msra.mxu0 0.0
    %616 = vmatprep.subr.mxu0 0.0
    %617 = vmatpush1.msra.mxu0 0.0
    %618 = vmatprep.subr.mxu0 0.0
    %619 = vmatpush1.msra.mxu0 0.0
    %620 = vmatprep.subr.mxu0 0.0
    %621 = vmatpush1.msra.mxu0 0.0
    %622 = vmatprep.subr.mxu0 0.0
    %623 = vmatpush1.msra.mxu0 0.0
    %624 = vmatprep.subr.mxu0 0.0
    %625 = vmatpush1.msra.mxu0 0.0
    %626 = vmatprep.subr.mxu0 0.0
    %627 = vmatpush1.msra.mxu0 0.0
    %628 = vmatprep.subr.mxu0 0.0
    %629 = vmatpush1.msra.mxu0 0.0
    %630 = vmatprep.subr.mxu0 0.0
    %631 = vmatpush1.msra.mxu0 0.0
    %632 = vmatprep.subr.mxu0 0.0
    %633 = vmatpush1.msra.mxu0 0.0
    %634 = vmatprep.subr.mxu0 0.0
    %635 = vmatpush1.msra.mxu0 0.0
    %636 = vmatprep.subr.mxu0 0.0
    %637 = vmatpush1.msra.mxu0 0.0
    %638 = vmatprep.subr.mxu0 0.0
    %639 = vmatpush1.msra.mxu0 0.0
    %640 = vmatprep.subr.mxu0 0.0
    %641 = vmatpush1.msra.mxu0 0.0
    %642 = vmatprep.subr.mxu0 0.0
    %643 = vmatpush1.msra.mxu0 0.0
    %644 = vmatprep.subr.mxu0 0.0
    %645 = vmatpush1.msra.mxu0 0.0
    %646 = vmatprep.subr.mxu0 0.0
    %647 = vmatpush1.msra.mxu0 0.0
    %648 = vmatprep.mubr.f32.mxu0 0.0
    %649 = vmatmul.mubr.f32.gmra.mrb[0].mxu0 %v582
    %v650 = vpop.f32.mrb[0].mxu0
    %v651 = vadd.f32 0.0, %v650
    %v652 = vpop.f32.mrb[0].mxu0
    %653 = vdwg.mxu0
    %655 = vrot.lane.b32.xlu0 %v651, 32
    %v656 = vpop.permute.xlu0 %655
    %v658 = vsel %vm60, %v486, %v656
    %v659 = vld [vmem:[%s6] sm:$0xff]
    %v660 = vld [vmem:[%s6 + $0x8] sm:$0xff]
    %v661 = vld [vmem:[%s6 + $0x10] sm:$0xff]
    %v662 = vld [vmem:[%s6 + $0x18] sm:$0xff]
    %v663 = vld [vmem:[%s6 + $0x20] sm:$0xff]
    %v664 = vld [vmem:[%s6 + $0x28] sm:$0xff]
    %v665 = vld [vmem:[%s6 + $0x30] sm:$0xff]
    %v666 = vld [vmem:[%s6 + $0x38] sm:$0xff]
    %v667 = vld [vmem:[%s7] sm:$0x1]
    %v669 = vlaneseq
    %v670 = vshrl.u32 %v669, 7
    %v671 = vsub.s32 0, %v670
    %v672 = vrot.slane %v667, %v671
    %v675 = vsel %vm181, %v658, 0
    %677 = vmatprep.subr.mxu0 0.0
    %678 = vmatpush1.msra.mxu0 %v659
    %679 = vmatprep.subr.mxu0 0.0
    %680 = vmatpush1.msra.mxu0 %v660
    %681 = vmatprep.subr.mxu0 0.0
    %682 = vmatpush1.msra.mxu0 %v661
    %683 = vmatprep.subr.mxu0 0.0
    %684 = vmatpush1.msra.mxu0 %v662
    %685 = vmatprep.subr.mxu0 0.0
    %686 = vmatpush1.msra.mxu0 %v663
    %687 = vmatprep.subr.mxu0 0.0
    %688 = vmatpush1.msra.mxu0 %v664
    %689 = vmatprep.subr.mxu0 0.0
    %690 = vmatpush1.msra.mxu0 %v665
    %691 = vmatprep.subr.mxu0 0.0
    %692 = vmatpush1.msra.mxu0 %v666
    %693 = vmatprep.subr.mxu0 0.0
    %694 = vmatpush1.msra.mxu0 0.0
    %695 = vmatprep.subr.mxu0 0.0
    %696 = vmatpush1.msra.mxu0 0.0
    %697 = vmatprep.subr.mxu0 0.0
    %698 = vmatpush1.msra.mxu0 0.0
    %699 = vmatprep.subr.mxu0 0.0
    %700 = vmatpush1.msra.mxu0 0.0
    %701 = vmatprep.subr.mxu0 0.0
    %702 = vmatpush1.msra.mxu0 0.0
    %703 = vmatprep.subr.mxu0 0.0
    %704 = vmatpush1.msra.mxu0 0.0
    %705 = vmatprep.subr.mxu0 0.0
    %706 = vmatpush1.msra.mxu0 0.0
    %707 = vmatprep.subr.mxu0 0.0
    %708 = vmatpush1.msra.mxu0 0.0
    %709 = vmatprep.subr.mxu0 0.0
    %710 = vmatpush1.msra.mxu0 0.0
    %711 = vmatprep.subr.mxu0 0.0
    %712 = vmatpush1.msra.mxu0 0.0
    %713 = vmatprep.subr.mxu0 0.0
    %714 = vmatpush1.msra.mxu0 0.0
    %715 = vmatprep.subr.mxu0 0.0
    %716 = vmatpush1.msra.mxu0 0.0
    %717 = vmatprep.subr.mxu0 0.0
    %718 = vmatpush1.msra.mxu0 0.0
    %719 = vmatprep.subr.mxu0 0.0
    %720 = vmatpush1.msra.mxu0 0.0
    %721 = vmatprep.subr.mxu0 0.0
    %722 = vmatpush1.msra.mxu0 0.0
    %723 = vmatprep.subr.mxu0 0.0
    %724 = vmatpush1.msra.mxu0 0.0
    %725 = vmatprep.subr.mxu0 0.0
    %726 = vmatpush1.msra.mxu0 0.0
    %727 = vmatprep.subr.mxu0 0.0
    %728 = vmatpush1.msra.mxu0 0.0
    %729 = vmatprep.subr.mxu0 0.0
    %730 = vmatpush1.msra.mxu0 0.0
    %731 = vmatprep.subr.mxu0 0.0
    %732 = vmatpush1.msra.mxu0 0.0
    %733 = vmatprep.subr.mxu0 0.0
    %734 = vmatpush1.msra.mxu0 0.0
    %735 = vmatprep.subr.mxu0 0.0
    %736 = vmatpush1.msra.mxu0 0.0
    %737 = vmatprep.subr.mxu0 0.0
    %738 = vmatpush1.msra.mxu0 0.0
    %739 = vmatprep.subr.mxu0 0.0
    %740 = vmatpush1.msra.mxu0 0.0
    %741 = vmatprep.mubr.f32.mxu0 0.0
    %742 = vmatmul.mubr.f32.gmra.mrb[0].mxu0 %v675
    %v743 = vpop.f32.mrb[0].mxu0
    %v744 = vadd.f32 %v672, %v743
    %v745 = vpop.f32.mrb[0].mxu0
    %746 = vdwg.mxu0
    %v747 = vld [vmem:[%s8] sm:$0xff]
    %v748 = vld [vmem:[%s8 + $0x8] sm:$0xff]
    %v749 = vld [vmem:[%s8 + $0x10] sm:$0xff]
    %v750 = vld [vmem:[%s8 + $0x18] sm:$0xff]
    %v751 = vld [vmem:[%s9] sm:$0xff]
    %v752 = vld [vmem:[%s9 + $0x8] sm:$0xff]
    %v753 = vld [vmem:[%s9 + $0x10] sm:$0xff]
    %v754 = vld [vmem:[%s9 + $0x18] sm:$0xff]
    %v755 = vld [vmem:[%s9 + $0x20] sm:$0xff]
    %v756 = vld [vmem:[%s9 + $0x28] sm:$0xff]
    %v757 = vld [vmem:[%s9 + $0x30] sm:$0xff]
    %v758 = vld [vmem:[%s9 + $0x38] sm:$0xff]
    %v760 = vsel %vm181, %v744, 0
    %762 = vmatprep.subr.mxu0 0.0
    %763 = vmatpush1.msra.mxu0 %v751
    %764 = vmatprep.subr.mxu0 0.0
    %765 = vmatpush1.msra.mxu0 %v752
    %766 = vmatprep.subr.mxu0 0.0
    %767 = vmatpush1.msra.mxu0 %v753
    %768 = vmatprep.subr.mxu0 0.0
    %769 = vmatpush1.msra.mxu0 %v754
    %770 = vmatprep.subr.mxu0 0.0
    %771 = vmatpush1.msra.mxu0 %v755
    %772 = vmatprep.subr.mxu0 0.0
    %773 = vmatpush1.msra.mxu0 %v756
    %774 = vmatprep.subr.mxu0 0.0
    %775 = vmatpush1.msra.mxu0 %v757
    %776 = vmatprep.subr.mxu0 0.0
    %777 = vmatpush1.msra.mxu0 %v758
    %778 = vmatprep.subr.mxu0 0.0
    %779 = vmatpush1.msra.mxu0 0.0
    %780 = vmatprep.subr.mxu0 0.0
    %781 = vmatpush1.msra.mxu0 0.0
    %782 = vmatprep.subr.mxu0 0.0
    %783 = vmatpush1.msra.mxu0 0.0
    %784 = vmatprep.subr.mxu0 0.0
    %785 = vmatpush1.msra.mxu0 0.0
    %786 = vmatprep.subr.mxu0 0.0
    %787 = vmatpush1.msra.mxu0 0.0
    %788 = vmatprep.subr.mxu0 0.0
    %789 = vmatpush1.msra.mxu0 0.0
    %790 = vmatprep.subr.mxu0 0.0
    %791 = vmatpush1.msra.mxu0 0.0
    %792 = vmatprep.subr.mxu0 0.0
    %793 = vmatpush1.msra.mxu0 0.0
    %794 = vmatprep.subr.mxu0 0.0
    %795 = vmatpush1.msra.mxu0 0.0
    %796 = vmatprep.subr.mxu0 0.0
    %797 = vmatpush1.msra.mxu0 0.0
    %798 = vmatprep.subr.mxu0 0.0
    %799 = vmatpush1.msra.mxu0 0.0
    %800 = vmatprep.subr.mxu0 0.0
    %801 = vmatpush1.msra.mxu0 0.0
    %802 = vmatprep.subr.mxu0 0.0
    %803 = vmatpush1.msra.mxu0 0.0
    %804 = vmatprep.subr.mxu0 0.0
    %805 = vmatpush1.msra.mxu0 0.0
    %806 = vmatprep.subr.mxu0 0.0
    %807 = vmatpush1.msra.mxu0 0.0
    %808 = vmatprep.subr.mxu0 0.0
    %809 = vmatpush1.msra.mxu0 0.0
    %810 = vmatprep.subr.mxu0 0.0
    %811 = vmatpush1.msra.mxu0 0.0
    %812 = vmatprep.subr.mxu0 0.0
    %813 = vmatpush1.msra.mxu0 0.0
    %814 = vmatprep.subr.mxu0 0.0
    %815 = vmatpush1.msra.mxu0 0.0
    %816 = vmatprep.subr.mxu0 0.0
    %817 = vmatpush1.msra.mxu0 0.0
    %818 = vmatprep.subr.mxu0 0.0
    %819 = vmatpush1.msra.mxu0 0.0
    %820 = vmatprep.subr.mxu0 0.0
    %821 = vmatpush1.msra.mxu0 0.0
    %822 = vmatprep.subr.mxu0 0.0
    %823 = vmatpush1.msra.mxu0 0.0
    %824 = vmatprep.subr.mxu0 0.0
    %825 = vmatpush1.msra.mxu0 0.0
    %826 = vmatprep.mubr.f32.mxu0 0.0
    %827 = vmatmul.mubr.f32.gmra.mrb[0].mxu0 %v760
    %v828 = vpop.f32.mrb[0].mxu0
    %v829 = vadd.f32 0.0, %v828
    %v830 = vpop.f32.mrb[0].mxu0
    %831 = vdwg.mxu0
    %832 = vmatprep.subr.mxu0 0.0
    %833 = vmatpush1.msra.mxu0 %v747
    %834 = vmatprep.subr.mxu0 0.0
    %835 = vmatpush1.msra.mxu0 %v748
    %836 = vmatprep.subr.mxu0 0.0
    %837 = vmatpush1.msra.mxu0 %v749
    %838 = vmatprep.subr.mxu0 0.0
    %839 = vmatpush1.msra.mxu0 %v750
    %840 = vmatprep.subr.mxu0 0.0
    %841 = vmatpush1.msra.mxu0 0.0
    %842 = vmatprep.subr.mxu0 0.0
    %843 = vmatpush1.msra.mxu0 0.0
    %844 = vmatprep.subr.mxu0 0.0
    %845 = vmatpush1.msra.mxu0 0.0
    %846 = vmatprep.subr.mxu0 0.0
    %847 = vmatpush1.msra.mxu0 0.0
    %848 = vmatprep.subr.mxu0 0.0
    %849 = vmatpush1.msra.mxu0 0.0
    %850 = vmatprep.subr.mxu0 0.0
    %851 = vmatpush1.msra.mxu0 0.0
    %852 = vmatprep.subr.mxu0 0.0
    %853 = vmatpush1.msra.mxu0 0.0
    %854 = vmatprep.subr.mxu0 0.0
    %855 = vmatpush1.msra.mxu0 0.0
    %856 = vmatprep.subr.mxu0 0.0
    %857 = vmatpush1.msra.mxu0 0.0
    %858 = vmatprep.subr.mxu0 0.0
    %859 = vmatpush1.msra.mxu0 0.0
    %860 = vmatprep.subr.mxu0 0.0
    %861 = vmatpush1.msra.mxu0 0.0
    %862 = vmatprep.subr.mxu0 0.0
    %863 = vmatpush1.msra.mxu0 0.0
    %864 = vmatprep.subr.mxu0 0.0
    %865 = vmatpush1.msra.mxu0 0.0
    %866 = vmatprep.subr.mxu0 0.0
    %867 = vmatpush1.msra.mxu0 0.0
    %868 = vmatprep.subr.mxu0 0.0
    %869 = vmatpush1.msra.mxu0 0.0
    %870 = vmatprep.subr.mxu0 0.0
    %871 = vmatpush1.msra.mxu0 0.0
    %872 = vmatprep.subr.mxu0 0.0
    %873 = vmatpush1.msra.mxu0 0.0
    %874 = vmatprep.subr.mxu0 0.0
    %875 = vmatpush1.msra.mxu0 0.0
    %876 = vmatprep.subr.mxu0 0.0
    %877 = vmatpush1.msra.mxu0 0.0
    %878 = vmatprep.subr.mxu0 0.0
    %879 = vmatpush1.msra.mxu0 0.0
    %880 = vmatprep.subr.mxu0 0.0
    %881 = vmatpush1.msra.mxu0 0.0
    %882 = vmatprep.subr.mxu0 0.0
    %883 = vmatpush1.msra.mxu0 0.0
    %884 = vmatprep.subr.mxu0 0.0
    %885 = vmatpush1.msra.mxu0 0.0
    %886 = vmatprep.subr.mxu0 0.0
    %887 = vmatpush1.msra.mxu0 0.0
    %888 = vmatprep.subr.mxu0 0.0
    %889 = vmatpush1.msra.mxu0 0.0
    %890 = vmatprep.subr.mxu0 0.0
    %891 = vmatpush1.msra.mxu0 0.0
    %892 = vmatprep.subr.mxu0 0.0
    %893 = vmatpush1.msra.mxu0 0.0
    %894 = vmatprep.subr.mxu0 0.0
    %895 = vmatpush1.msra.mxu0 0.0
    %896 = vmatprep.mubr.f32.mxu0 0.0
    %897 = vmatmul.mubr.f32.gmra.mrb[0].mxu0 %v62
    %v898 = vpop.f32.mrb[0].mxu0
    %v899 = vadd.f32 %v829, %v898
    %v900 = vpop.f32.mrb[0].mxu0
    %901 = vdwg.mxu0
    %v902 = vld [vmem:[%s10] sm:$0x1]
    %v904 = vlaneseq
    %v905 = vshrl.u32 %v904, 7
    %v906 = vsub.s32 0, %v905
    %v907 = vrot.slane %v902, %v906
    %v909 = vadd.f32 %v899, %v907
    %v910 = vmax.f32 %v909, 0.0
    %v911 = vld [vmem:[%s11] sm:$0xff]
    %v912 = vld [vmem:[%s11 + $0x8] sm:$0xff]
    %v913 = vld [vmem:[%s11 + $0x10] sm:$0xff]
    %v914 = vld [vmem:[%s11 + $0x18] sm:$0xff]
    %v915 = vld [vmem:[%s12] sm:$0x1]
    %v917 = vlaneseq
    %v918 = vshrl.u32 %v917, 7
    %v919 = vsub.s32 0, %v918
    %v920 = vrot.slane %v915, %v919
    %v923 = vsel %vm60, %v910, 0
    %925 = vmatprep.subr.mxu0 0.0
    %926 = vmatpush1.msra.mxu0 %v911
    %927 = vmatprep.subr.mxu0 0.0
    %928 = vmatpush1.msra.mxu0 %v912
    %929 = vmatprep.subr.mxu0 0.0
    %930 = vmatpush1.msra.mxu0 %v913
    %931 = vmatprep.subr.mxu0 0.0
    %932 = vmatpush1.msra.mxu0 %v914
    %933 = vmatprep.subr.mxu0 0.0
    %934 = vmatpush1.msra.mxu0 0.0
    %935 = vmatprep.subr.mxu0 0.0
    %936 = vmatpush1.msra.mxu0 0.0
    %937 = vmatprep.subr.mxu0 0.0
    %938 = vmatpush1.msra.mxu0 0.0
    %939 = vmatprep.subr.mxu0 0.0
    %940 = vmatpush1.msra.mxu0 0.0
    %941 = vmatprep.subr.mxu0 0.0
    %942 = vmatpush1.msra.mxu0 0.0
    %943 = vmatprep.subr.mxu0 0.0
    %944 = vmatpush1.msra.mxu0 0.0
    %945 = vmatprep.subr.mxu0 0.0
    %946 = vmatpush1.msra.mxu0 0.0
    %947 = vmatprep.subr.mxu0 0.0
    %948 = vmatpush1.msra.mxu0 0.0
    %949 = vmatprep.subr.mxu0 0.0
    %950 = vmatpush1.msra.mxu0 0.0
    %951 = vmatprep.subr.mxu0 0.0
    %952 = vmatpush1.msra.mxu0 0.0
    %953 = vmatprep.subr.mxu0 0.0
    %954 = vmatpush1.msra.mxu0 0.0
    %955 = vmatprep.subr.mxu0 0.0
    %956 = vmatpush1.msra.mxu0 0.0
    %957 = vmatprep.subr.mxu0 0.0
    %958 = vmatpush1.msra.mxu0 0.0
    %959 = vmatprep.subr.mxu0 0.0
    %960 = vmatpush1.msra.mxu0 0.0
    %961 = vmatprep.subr.mxu0 0.0
    %962 = vmatpush1.msra.mxu0 0.0
    %963 = vmatprep.subr.mxu0 0.0
    %964 = vmatpush1.msra.mxu0 0.0
    %965 = vmatprep.subr.mxu0 0.0
    %966 = vmatpush1.msra.mxu0 0.0
    %967 = vmatprep.subr.mxu0 0.0
    %968 = vmatpush1.msra.mxu0 0.0
    %969 = vmatprep.subr.mxu0 0.0
    %970 = vmatpush1.msra.mxu0 0.0
    %971 = vmatprep.subr.mxu0 0.0
    %972 = vmatpush1.msra.mxu0 0.0
    %973 = vmatprep.subr.mxu0 0.0
    %974 = vmatpush1.msra.mxu0 0.0
    %975 = vmatprep.subr.mxu0 0.0
    %976 = vmatpush1.msra.mxu0 0.0
    %977 = vmatprep.subr.mxu0 0.0
    %978 = vmatpush1.msra.mxu0 0.0
    %979 = vmatprep.subr.mxu0 0.0
    %980 = vmatpush1.msra.mxu0 0.0
    %981 = vmatprep.subr.mxu0 0.0
    %982 = vmatpush1.msra.mxu0 0.0
    %983 = vmatprep.subr.mxu0 0.0
    %984 = vmatpush1.msra.mxu0 0.0
    %985 = vmatprep.subr.mxu0 0.0
    %986 = vmatpush1.msra.mxu0 0.0
    %987 = vmatprep.subr.mxu0 0.0
    %988 = vmatpush1.msra.mxu0 0.0
    %989 = vmatprep.mubr.f32.mxu0 0.0
    %990 = vmatmul.mubr.f32.gmra.mrb[0].mxu0 %v923
    %v991 = vpop.f32.mrb[0].mxu0
    %v992 = vadd.f32 %v920, %v991
    %v993 = vpop.f32.mrb[0].mxu0
    %994 = vdwg.mxu0
    %995 = vst.msk [vmem:[#allocation2] sm:$0xff] %vm60, %v992
    // Predicated region
    $region54: #{_device_forward.3} parent=1 // pred_check
      _
    $region55: #{_device_forward.3} parent=1 // pred_check_branch
      %997 = sbr.rel (0) target = $region57
    $region56: #{_device_forward.3} parent=1 // pred_region
      %s999 = ssub.s32 128, 128
      %1000 = vsyncadd [#allocation3], %s999
      %s1002 = sshll.u32 [#allocation2], 4
      %s1003 = int_to_ptr.vmem [resolvable:$true] %s1002
      %1005 = dma.vmem_to_hbm [thread:$0]  %s1003, 128, %s13, [#allocation3]
    $region57: #{_device_forward.3} parent=1 // pred_fallthru
      _
    // Predicated region
    $region58: #{_device_forward.3} parent=1 // pred_check
      _
    $region59: #{_device_forward.3} parent=1 // pred_check_branch
      %1007 = sbr.rel (0) target = $region61
    $region60: #{_device_forward.3} parent=1 // pred_region
      %1008 = dma.done [#allocation3], 128
    $region61: #{_device_forward.3} parent=1 // pred_fallthru
      _
    %1009 = vsyncpa [#allocation3], 1

// kernel: _device_forward.2
$region0: #{_device_forward.2}
  #allocation0 [shape = 'u32[]', space=smem, size = 0x4, offset = 0x4, fixed_abs, tag = 'smem constant byte address 0x4 - core index']
  #allocation1 [shape = 'u32[144,128]{1,0:T(1,128)}', space=vmem, size = 0x12000, scoped, tag = 'internal scratch']
  %s0 = inlined_call_operand.vmem [shape: f32[8,32], index: 0, kind: input, shape index: {}]
  %s1 = inlined_call_operand.vmem [shape: f32[8,320], index: 1, kind: input, shape index: {}]
  %s2 = inlined_call_operand.vmem [shape: f32[32,64], index: 2, kind: input, shape index: {}]
  %s3 = inlined_call_operand.vmem [shape: f32[1,64], index: 3, kind: input, shape index: {}]
  %s4 = inlined_call_operand.vmem [shape: f32[320,128], index: 4, kind: input, shape index: {}]
  %s5 = inlined_call_operand.vmem [shape: f32[1,128], index: 5, kind: input, shape index: {}]
  %s6 = inlined_call_operand.vmem [shape: f32[64,64], index: 6, kind: input, shape index: {}]
  %s7 = inlined_call_operand.vmem [shape: f32[1,64], index: 7, kind: input, shape index: {}]
  %s8 = inlined_call_operand.vmem [shape: f32[32,32], index: 8, kind: input, shape index: {}]
  %s9 = inlined_call_operand.vmem [shape: f32[64,32], index: 9, kind: input, shape index: {}]
  %s10 = inlined_call_operand.vmem [shape: f32[1,32], index: 10, kind: input, shape index: {}]
  %s11 = inlined_call_operand.vmem [shape: f32[32,32], index: 11, kind: input, shape index: {}]
  %s12 = inlined_call_operand.vmem [shape: f32[1,32], index: 12, kind: input, shape index: {}]
  %s13 = inlined_call_operand.vmem [shape: f32[8,32], index: 13, kind: output, shape index: {}]
  %s14 = sld [smem:[#allocation0]]
  $region62: #{_device_forward.2} parent=0
    _
  %s16 = ssub.s32 1, %s14
  %s17 = scalar_select 0, %s16, %s14
  // Predicated region
  $region2: #{_device_forward.2} parent=0 // pred_check
    _
  $region3: #{_device_forward.2} parent=0 // pred_check_branch
    %19 = sbr.rel (0) target = $region5
  $region4: #{_device_forward.2} parent=0 // pred_region
    _
  $region5: #{_device_forward.2} parent=0 // pred_fallthru
    _
  // Predicated region
  $region6: #{_device_forward.2} parent=0 // pred_check
    _
  $region7: #{_device_forward.2} parent=0 // pred_check_branch
    %21 = sbr.rel (0) target = $region9
  $region8: #{_device_forward.2} parent=0 // pred_region
    _
  $region9: #{_device_forward.2} parent=0 // pred_fallthru
    _
  // Predicated region
  $region10: #{_device_forward.2} parent=0 // pred_check
    _
  $region11: #{_device_forward.2} parent=0 // pred_check_branch
    %23 = sbr.rel (0) target = $region13
  $region12: #{_device_forward.2} parent=0 // pred_region
    _
  $region13: #{_device_forward.2} parent=0 // pred_fallthru
    _
  // Predicated region
  $region14: #{_device_forward.2} parent=0 // pred_check
    _
  $region15: #{_device_forward.2} parent=0 // pred_check_branch
    %25 = sbr.rel (0) target = $region17
  $region16: #{_device_forward.2} parent=0 // pred_region
    _
  $region17: #{_device_forward.2} parent=0 // pred_fallthru
    _
  // Predicated region
  $region18: #{_device_forward.2} parent=0 // pred_check
    _
  $region19: #{_device_forward.2} parent=0 // pred_check_branch
    %27 = sbr.rel (0) target = $region21
  $region20: #{_device_forward.2} parent=0 // pred_region
    _
  $region21: #{_device_forward.2} parent=0 // pred_fallthru
    _
  // Predicated region
  $region22: #{_device_forward.2} parent=0 // pred_check
    _
  $region23: #{_device_forward.2} parent=0 // pred_check_branch
    %29 = sbr.rel (0) target = $region25
  $region24: #{_device_forward.2} parent=0 // pred_region
    _
  $region25: #{_device_forward.2} parent=0 // pred_fallthru
    _
  // Predicated region
  $region26: #{_device_forward.2} parent=0 // pred_check
    _
  $region27: #{_device_forward.2} parent=0 // pred_check_branch
    %31 = sbr.rel (0) target = $region29
  $region28: #{_device_forward.2} parent=0 // pred_region
    _
  $region29: #{_device_forward.2} parent=0 // pred_fallthru
    _
  // Predicated region
  $region30: #{_device_forward.2} parent=0 // pred_check
    _
  $region31: #{_device_forward.2} parent=0 // pred_check_branch
    %33 = sbr.rel (0) target = $region33
  $region32: #{_device_forward.2} parent=0 // pred_region
    _
  $region33: #{_device_forward.2} parent=0 // pred_fallthru
    _
  // Predicated region
  $region34: #{_device_forward.2} parent=0 // pred_check
    _
  $region35: #{_device_forward.2} parent=0 // pred_check_branch
    %35 = sbr.rel (0) target = $region37
  $region36: #{_device_forward.2} parent=0 // pred_region
    _
  $region37: #{_device_forward.2} parent=0 // pred_fallthru
    _
  // Predicated region
  $region38: #{_device_forward.2} parent=0 // pred_check
    _
  $region39: #{_device_forward.2} parent=0 // pred_check_branch
    %37 = sbr.rel (0) target = $region41
  $region40: #{_device_forward.2} parent=0 // pred_region
    _
  $region41: #{_device_forward.2} parent=0 // pred_fallthru
    _
  // Predicated region
  $region42: #{_device_forward.2} parent=0 // pred_check
    _
  $region43: #{_device_forward.2} parent=0 // pred_check_branch
    %39 = sbr.rel (0) target = $region45
  $region44: #{_device_forward.2} parent=0 // pred_region
    _
  $region45: #{_device_forward.2} parent=0 // pred_fallthru
    _
  // Predicated region
  $region46: #{_device_forward.2} parent=0 // pred_check
    _
  $region47: #{_device_forward.2} parent=0 // pred_check_branch
    %41 = sbr.rel (0) target = $region49
  $region48: #{_device_forward.2} parent=0 // pred_region
    _
  $region49: #{_device_forward.2} parent=0 // pred_fallthru
    _
  // Predicated region
  $region50: #{_device_forward.2} parent=0 // pred_check
    _
  $region51: #{_device_forward.2} parent=0 // pred_check_branch
    %43 = sbr.rel (0) target = $region53
  $region52: #{_device_forward.2} parent=0 // pred_region
    _
  $region53: #{_device_forward.2} parent=0 // pred_fallthru
    _
  %v44 = vld [vmem:[%s0] sm:$0xff]
  %v45 = vld [vmem:[%s1] sm:$0xff]
  %v46 = vld [vmem:[%s1 + $0x8] sm:$0xff]
  %v47 = vld [vmem:[%s1 + $0x10] sm:$0xff]
  %v48 = vld [vmem:[%s2] sm:$0xff]
  %v49 = vld [vmem:[%s2 + $0x8] sm:$0xff]
  %v50 = vld [vmem:[%s2 + $0x10] sm:$0xff]
  %v51 = vld [vmem:[%s2 + $0x18] sm:$0xff]
  %v52 = vld [vmem:[%s3] sm:$0x1]
  %v54 = vlaneseq
  %v55 = vshrl.u32 %v54, 7
  %v56 = vsub.s32 0, %v55
  %v57 = vrot.slane %v52, %v56
  %vm59 = vcmask 261120
  %v61 = vsel %vm59, %v44, 0
  %63 = vmatprep.subr.mxu0 0.0
  %64 = vmatpush1.msra.mxu0 %v48
  %65 = vmatprep.subr.mxu0 0.0
  %66 = vmatpush1.msra.mxu0 %v49
  %67 = vmatprep.subr.mxu0 0.0
  %68 = vmatpush1.msra.mxu0 %v50
  %69 = vmatprep.subr.mxu0 0.0
  %70 = vmatpush1.msra.mxu0 %v51
  %71 = vmatprep.subr.mxu0 0.0
  %72 = vmatpush1.msra.mxu0 0.0
  %73 = vmatprep.subr.mxu0 0.0
  %74 = vmatpush1.msra.mxu0 0.0
  %75 = vmatprep.subr.mxu0 0.0
  %76 = vmatpush1.msra.mxu0 0.0
  %77 = vmatprep.subr.mxu0 0.0
  %78 = vmatpush1.msra.mxu0 0.0
  %79 = vmatprep.subr.mxu0 0.0
  %80 = vmatpush1.msra.mxu0 0.0
  %81 = vmatprep.subr.mxu0 0.0
  %82 = vmatpush1.msra.mxu0 0.0
  %83 = vmatprep.subr.mxu0 0.0
  %84 = vmatpush1.msra.mxu0 0.0
  %85 = vmatprep.subr.mxu0 0.0
  %86 = vmatpush1.msra.mxu0 0.0
  %87 = vmatprep.subr.mxu0 0.0
  %88 = vmatpush1.msra.mxu0 0.0
  %89 = vmatprep.subr.mxu0 0.0
  %90 = vmatpush1.msra.mxu0 0.0
  %91 = vmatprep.subr.mxu0 0.0
  %92 = vmatpush1.msra.mxu0 0.0
  %93 = vmatprep.subr.mxu0 0.0
  %94 = vmatpush1.msra.mxu0 0.0
  %95 = vmatprep.subr.mxu0 0.0
  %96 = vmatpush1.msra.mxu0 0.0
  %97 = vmatprep.subr.mxu0 0.0
  %98 = vmatpush1.msra.mxu0 0.0
  %99 = vmatprep.subr.mxu0 0.0
  %100 = vmatpush1.msra.mxu0 0.0
  %101 = vmatprep.subr.mxu0 0.0
  %102 = vmatpush1.msra.mxu0 0.0
  %103 = vmatprep.subr.mxu0 0.0
  %104 = vmatpush1.msra.mxu0 0.0
  %105 = vmatprep.subr.mxu0 0.0
  %106 = vmatpush1.msra.mxu0 0.0
  %107 = vmatprep.subr.mxu0 0.0
  %108 = vmatpush1.msra.mxu0 0.0
  %109 = vmatprep.subr.mxu0 0.0
  %110 = vmatpush1.msra.mxu0 0.0
  %111 = vmatprep.subr.mxu0 0.0
  %112 = vmatpush1.msra.mxu0 0.0
  %113 = vmatprep.subr.mxu0 0.0
  %114 = vmatpush1.msra.mxu0 0.0
  %115 = vmatprep.subr.mxu0 0.0
  %116 = vmatpush1.msra.mxu0 0.0
  %117 = vmatprep.subr.mxu0 0.0
  %118 = vmatpush1.msra.mxu0 0.0
  %119 = vmatprep.subr.mxu0 0.0
  %120 = vmatpush1.msra.mxu0 0.0
  %121 = vmatprep.subr.mxu0 0.0
  %122 = vmatpush1.msra.mxu0 0.0
  %123 = vmatprep.subr.mxu0 0.0
  %124 = vmatpush1.msra.mxu0 0.0
  %125 = vmatprep.subr.mxu0 0.0
  %126 = vmatpush1.msra.mxu0 0.0
  %127 = vmatprep.mubr.f32.mxu0 0.0
  %128 = vmatmul.mubr.f32.gmra.mrb[0].mxu0 %v61
  %v129 = vpop.f32.mrb[0].mxu0
  %v130 = vadd.f32 %v57, %v129
  %v131 = vpop.f32.mrb[0].mxu0
  %132 = vdwg.mxu0
  %v133 = vld [vmem:[%s4] sm:$0xff]
  %v134 = vld [vmem:[%s4 + $0x8] sm:$0xff]
  %v135 = vld [vmem:[%s4 + $0x10] sm:$0xff]
  %v136 = vld [vmem:[%s4 + $0x18] sm:$0xff]
  %v137 = vld [vmem:[%s4 + $0x20] sm:$0xff]
  %v138 = vld [vmem:[%s4 + $0x28] sm:$0xff]
  %v139 = vld [vmem:[%s4 + $0x30] sm:$0xff]
  %v140 = vld [vmem:[%s4 + $0x38] sm:$0xff]
  %v141 = vld [vmem:[%s4 + $0x40] sm:$0xff]
  %v142 = vld [vmem:[%s4 + $0x48] sm:$0xff]
  %v143 = vld [vmem:[%s4 + $0x50] sm:$0xff]
  %v144 = vld [vmem:[%s4 + $0x58] sm:$0xff]
  %v145 = vld [vmem:[%s4 + $0x60] sm:$0xff]
  %v146 = vld [vmem:[%s4 + $0x68] sm:$0xff]
  %v147 = vld [vmem:[%s4 + $0x70] sm:$0xff]
  %v148 = vld [vmem:[%s4 + $0x78] sm:$0xff]
  %v149 = vld [vmem:[%s4 + $0x80] sm:$0xff]
  %v150 = vld [vmem:[%s4 + $0x88] sm:$0xff]
  %v151 = vld [vmem:[%s4 + $0x90] sm:$0xff]
  %v152 = vld [vmem:[%s4 + $0x98] sm:$0xff]
  %v153 = vld [vmem:[%s4 + $0xa0] sm:$0xff]
  %v154 = vld [vmem:[%s4 + $0xa8] sm:$0xff]
  %v155 = vld [vmem:[%s4 + $0xb0] sm:$0xff]
  %v156 = vld [vmem:[%s4 + $0xb8] sm:$0xff]
  %v157 = vld [vmem:[%s4 + $0xc0] sm:$0xff]
  %v158 = vld [vmem:[%s4 + $0xc8] sm:$0xff]
  %v159 = vld [vmem:[%s4 + $0xd0] sm:$0xff]
  %v160 = vld [vmem:[%s4 + $0xd8] sm:$0xff]
  %v161 = vld [vmem:[%s4 + $0xe0] sm:$0xff]
  %v162 = vld [vmem:[%s4 + $0xe8] sm:$0xff]
  %v163 = vld [vmem:[%s4 + $0xf0] sm:$0xff]
  %v164 = vld [vmem:[%s4 + $0xf8] sm:$0xff]
  %v165 = vld [vmem:[%s4 + $0x100] sm:$0xff]
  %v166 = vld [vmem:[%s4 + $0x108] sm:$0xff]
  %v167 = vld [vmem:[%s4 + $0x110] sm:$0xff]
  %v168 = vld [vmem:[%s4 + $0x118] sm:$0xff]
  %v169 = vld [vmem:[%s4 + $0x120] sm:$0xff]
  %v170 = vld [vmem:[%s4 + $0x128] sm:$0xff]
  %v171 = vld [vmem:[%s4 + $0x130] sm:$0xff]
  %v172 = vld [vmem:[%s4 + $0x138] sm:$0xff]
  %v173 = vld [vmem:[%s5] sm:$0x1]
  %v175 = vlaneseq
  %v176 = vshrl.u32 %v175, 7
  %v177 = vsub.s32 0, %v176
  %v178 = vrot.slane %v173, %v177
  %vm180 = vcmask 523264
  %v182 = vsel %vm180, %v47, 0
  %184 = vmatprep.subr.mxu0 0.0
  %185 = vmatpush1.msra.mxu0 %v133
  %186 = vmatprep.subr.mxu0 0.0
  %187 = vmatpush1.msra.mxu0 %v134
  %188 = vmatprep.subr.mxu0 0.0
  %189 = vmatpush1.msra.mxu0 %v135
  %190 = vmatprep.subr.mxu0 0.0
  %191 = vmatpush1.msra.mxu0 %v136
  %192 = vmatprep.subr.mxu0 0.0
  %193 = vmatpush1.msra.mxu0 %v137
  %194 = vmatprep.subr.mxu0 0.0
  %195 = vmatpush1.msra.mxu0 %v138
  %196 = vmatprep.subr.mxu0 0.0
  %197 = vmatpush1.msra.mxu0 %v139
  %198 = vmatprep.subr.mxu0 0.0
  %199 = vmatpush1.msra.mxu0 %v140
  %200 = vmatprep.subr.mxu0 0.0
  %201 = vmatpush1.msra.mxu0 %v141
  %202 = vmatprep.subr.mxu0 0.0
  %203 = vmatpush1.msra.mxu0 %v142
  %204 = vmatprep.subr.mxu0 0.0
  %205 = vmatpush1.msra.mxu0 %v143
  %206 = vmatprep.subr.mxu0 0.0
  %207 = vmatpush1.msra.mxu0 %v144
  %208 = vmatprep.subr.mxu0 0.0
  %209 = vmatpush1.msra.mxu0 %v145
  %210 = vmatprep.subr.mxu0 0.0
  %211 = vmatpush1.msra.mxu0 %v146
  %212 = vmatprep.subr.mxu0 0.0
  %213 = vmatpush1.msra.mxu0 %v147
  %214 = vmatprep.subr.mxu0 0.0
  %215 = vmatpush1.msra.mxu0 %v148
  %216 = vmatprep.subr.mxu0 0.0
  %217 = vmatpush1.msra.mxu0 %v149
  %218 = vmatprep.subr.mxu0 0.0
  %219 = vmatpush1.msra.mxu0 %v150
  %220 = vmatprep.subr.mxu0 0.0
  %221 = vmatpush1.msra.mxu0 %v151
  %222 = vmatprep.subr.mxu0 0.0
  %223 = vmatpush1.msra.mxu0 %v152
  %224 = vmatprep.subr.mxu0 0.0
  %225 = vmatpush1.msra.mxu0 %v153
  %226 = vmatprep.subr.mxu0 0.0
  %227 = vmatpush1.msra.mxu0 %v154
  %228 = vmatprep.subr.mxu0 0.0
  %229 = vmatpush1.msra.mxu0 %v155
  %230 = vmatprep.subr.mxu0 0.0
  %231 = vmatpush1.msra.mxu0 %v156
  %232 = vmatprep.subr.mxu0 0.0
  %233 = vmatpush1.msra.mxu0 %v157
  %234 = vmatprep.subr.mxu0 0.0
  %235 = vmatpush1.msra.mxu0 %v158
  %236 = vmatprep.subr.mxu0 0.0
  %237 = vmatpush1.msra.mxu0 %v159
  %238 = vmatprep.subr.mxu0 0.0
  %239 = vmatpush1.msra.mxu0 %v160
  %240 = vmatprep.subr.mxu0 0.0
  %241 = vmatpush1.msra.mxu0 %v161
  %242 = vmatprep.subr.mxu0 0.0
  %243 = vmatpush1.msra.mxu0 %v162
  %244 = vmatprep.subr.mxu0 0.0
  %245 = vmatpush1.msra.mxu0 %v163
  %246 = vmatprep.subr.mxu0 0.0
  %247 = vmatpush1.msra.mxu0 %v164
  %248 = vmatprep.mubr.f32.mxu0 %v46
  %249 = vmatmul.mubr.f32.gmra.mrb[0].mxu0 %v45
  %v250 = vpop.f32.mrb[0].mxu0
  %v251 = vadd.f32 %v178, %v250
  %v252 = vpop.f32.mrb[0].mxu0
  %253 = vdwg.mxu0
  %254 = vmatprep.subr.mxu0 0.0
  %255 = vmatpush1.msra.mxu0 %v165
  %256 = vmatprep.subr.mxu0 0.0
  %257 = vmatpush1.msra.mxu0 %v166
  %258 = vmatprep.subr.mxu0 0.0
  %259 = vmatpush1.msra.mxu0 %v167
  %260 = vmatprep.subr.mxu0 0.0
  %261 = vmatpush1.msra.mxu0 %v168
  %262 = vmatprep.subr.mxu0 0.0
  %263 = vmatpush1.msra.mxu0 %v169
  %264 = vmatprep.subr.mxu0 0.0
  %265 = vmatpush1.msra.mxu0 %v170
  %266 = vmatprep.subr.mxu0 0.0
  %267 = vmatpush1.msra.mxu0 %v171
  %268 = vmatprep.subr.mxu0 0.0
  %269 = vmatpush1.msra.mxu0 %v172
  %270 = vmatprep.subr.mxu0 0.0
  %271 = vmatpush1.msra.mxu0 0.0
  %272 = vmatprep.subr.mxu0 0.0
  %273 = vmatpush1.msra.mxu0 0.0
  %274 = vmatprep.subr.mxu0 0.0
  %275 = vmatpush1.msra.mxu0 0.0
  %276 = vmatprep.subr.mxu0 0.0
  %277 = vmatpush1.msra.mxu0 0.0
  %278 = vmatprep.subr.mxu0 0.0
  %279 = vmatpush1.msra.mxu0 0.0
  %280 = vmatprep.subr.mxu0 0.0
  %281 = vmatpush1.msra.mxu0 0.0
  %282 = vmatprep.subr.mxu0 0.0
  %283 = vmatpush1.msra.mxu0 0.0
  %284 = vmatprep.subr.mxu0 0.0
  %285 = vmatpush1.msra.mxu0 0.0
  %286 = vmatprep.subr.mxu0 0.0
  %287 = vmatpush1.msra.mxu0 0.0
  %288 = vmatprep.subr.mxu0 0.0
  %289 = vmatpush1.msra.mxu0 0.0
  %290 = vmatprep.subr.mxu0 0.0
  %291 = vmatpush1.msra.mxu0 0.0
  %292 = vmatprep.subr.mxu0 0.0
  %293 = vmatpush1.msra.mxu0 0.0
  %294 = vmatprep.subr.mxu0 0.0
  %295 = vmatpush1.msra.mxu0 0.0
  %296 = vmatprep.subr.mxu0 0.0
  %297 = vmatpush1.msra.mxu0 0.0
  %298 = vmatprep.subr.mxu0 0.0
  %299 = vmatpush1.msra.mxu0 0.0
  %300 = vmatprep.subr.mxu0 0.0
  %301 = vmatpush1.msra.mxu0 0.0
  %302 = vmatprep.subr.mxu0 0.0
  %303 = vmatpush1.msra.mxu0 0.0
  %304 = vmatprep.subr.mxu0 0.0
  %305 = vmatpush1.msra.mxu0 0.0
  %306 = vmatprep.subr.mxu0 0.0
  %307 = vmatpush1.msra.mxu0 0.0
  %308 = vmatprep.subr.mxu0 0.0
  %309 = vmatpush1.msra.mxu0 0.0
  %310 = vmatprep.subr.mxu0 0.0
  %311 = vmatpush1.msra.mxu0 0.0
  %312 = vmatprep.subr.mxu0 0.0
  %313 = vmatpush1.msra.mxu0 0.0
  %314 = vmatprep.subr.mxu0 0.0
  %315 = vmatpush1.msra.mxu0 0.0
  %316 = vmatprep.subr.mxu0 0.0
  %317 = vmatpush1.msra.mxu0 0.0
  %318 = vmatprep.mubr.f32.mxu0 0.0
  %319 = vmatmul.mubr.f32.gmra.mrb[0].mxu0 %v182
  %v320 = vpop.f32.mrb[0].mxu0
  %v321 = vadd.f32 %v251, %v320
  %v322 = vpop.f32.mrb[0].mxu0
  %323 = vdwg.mxu0
  %v325 = vsel %vm59, %v130, 0
  %v328 = vsel %vm59, %v321, 0
  %330 = vmatprep.subr.mxu0 0.0
  %331 = vmatpush1.xpose.msra.mxu0 %v328
  %332 = vmatprep.subr.mxu0 0.0
  %333 = vmatpush1.xpose.msra.mxu0 0.0
  %334 = vmatprep.subr.mxu0 0.0
  %335 = vmatpush1.xpose.msra.mxu0 0.0
  %336 = vmatprep.subr.mxu0 0.0
  %337 = vmatpush1.xpose.msra.mxu0 0.0
  %338 = vmatprep.subr.mxu0 0.0
  %339 = vmatpush1.xpose.msra.mxu0 0.0
  %340 = vmatprep.subr.mxu0 0.0
  %341 = vmatpush1.xpose.msra.mxu0 0.0
  %342 = vmatprep.subr.mxu0 0.0
  %343 = vmatpush1.xpose.msra.mxu0 0.0
  %344 = vmatprep.subr.mxu0 0.0
  %345 = vmatpush1.xpose.msra.mxu0 0.0
  %346 = vmatprep.subr.mxu0 0.0
  %347 = vmatpush1.xpose.msra.mxu0 0.0
  %348 = vmatprep.subr.mxu0 0.0
  %349 = vmatpush1.xpose.msra.mxu0 0.0
  %350 = vmatprep.subr.mxu0 0.0
  %351 = vmatpush1.xpose.msra.mxu0 0.0
  %352 = vmatprep.subr.mxu0 0.0
  %353 = vmatpush1.xpose.msra.mxu0 0.0
  %354 = vmatprep.subr.mxu0 0.0
  %355 = vmatpush1.xpose.msra.mxu0 0.0
  %356 = vmatprep.subr.mxu0 0.0
  %357 = vmatpush1.xpose.msra.mxu0 0.0
  %358 = vmatprep.subr.mxu0 0.0
  %359 = vmatpush1.xpose.msra.mxu0 0.0
  %360 = vmatprep.subr.mxu0 0.0
  %361 = vmatpush1.xpose.msra.mxu0 0.0
  %362 = vmatprep.subr.mxu0 0.0
  %363 = vmatpush1.xpose.msra.mxu0 0.0
  %364 = vmatprep.subr.mxu0 0.0
  %365 = vmatpush1.xpose.msra.mxu0 0.0
  %366 = vmatprep.subr.mxu0 0.0
  %367 = vmatpush1.xpose.msra.mxu0 0.0
  %368 = vmatprep.subr.mxu0 0.0
  %369 = vmatpush1.xpose.msra.mxu0 0.0
  %370 = vmatprep.subr.mxu0 0.0
  %371 = vmatpush1.xpose.msra.mxu0 0.0
  %372 = vmatprep.subr.mxu0 0.0
  %373 = vmatpush1.xpose.msra.mxu0 0.0
  %374 = vmatprep.subr.mxu0 0.0
  %375 = vmatpush1.xpose.msra.mxu0 0.0
  %376 = vmatprep.subr.mxu0 0.0
  %377 = vmatpush1.xpose.msra.mxu0 0.0
  %378 = vmatprep.subr.mxu0 0.0
  %379 = vmatpush1.xpose.msra.mxu0 0.0
  %380 = vmatprep.subr.mxu0 0.0
  %381 = vmatpush1.xpose.msra.mxu0 0.0
  %382 = vmatprep.subr.mxu0 0.0
  %383 = vmatpush1.xpose.msra.mxu0 0.0
  %384 = vmatprep.subr.mxu0 0.0
  %385 = vmatpush1.xpose.msra.mxu0 0.0
  %386 = vmatprep.subr.mxu0 0.0
  %387 = vmatpush1.xpose.msra.mxu0 0.0
  %388 = vmatprep.subr.mxu0 0.0
  %389 = vmatpush1.xpose.msra.mxu0 0.0
  %390 = vmatprep.subr.mxu0 0.0
  %391 = vmatpush1.xpose.msra.mxu0 0.0
  %392 = vmatprep.subr.mxu0 0.0
  %393 = vmatpush1.xpose.msra.mxu0 0.0
  %394 = vmatprep.mubr.f32.mxu0 0.0
  %395 = vmatmul.mubr.f32.gmra.mrb[0].mxu0 %v325
  %v396 = vpop.f32.mrb[0].mxu0
  %v397 = vadd.f32 0.0, %v396
  %v398 = vpop.f32.mrb[0].mxu0
  %399 = vdwg.mxu0
  %vm400 = vcmask 64512
  %v401 = vsel %vm400, %v397, -inf
  %402 = vmax.xlane.f32.xlu0 %v401
  %v403 = vpop.xlane.xlu0 %402
  %v404 = vsub.f32 %v397, %v403
  %v405 = vmul.f32 %v404, 1.442695
  %v406 = vpow.pop %v405
  %v407 = vsel %vm400, %v406, 0.0
  %408 = vadd.xlane.f32.xlu0 %v407
  %v409 = vpop.xlane.xlu0 %408
  %v410 = vrcp.pop %v409
  %v411 = vmul.f32 %v406, %v410
  %412 = vrot.lane.b32.xlu0 %v321, 64
  %v413 = vpop.permute.xlu0 %412
  %v416 = vsel %vm400, %v411, 0
  %418 = vmatprep.subr.mxu0 0.0
  %419 = vmatpush1.msra.mxu0 %v413
  %420 = vmatprep.subr.mxu0 0.0
  %421 = vmatpush1.msra.mxu0 0.0
  %422 = vmatprep.subr.mxu0 0.0
  %423 = vmatpush1.msra.mxu0 0.0
  %424 = vmatprep.subr.mxu0 0.0
  %425 = vmatpush1.msra.mxu0 0.0
  %426 = vmatprep.subr.mxu0 0.0
  %427 = vmatpush1.msra.mxu0 0.0
  %428 = vmatprep.subr.mxu0 0.0
  %429 = vmatpush1.msra.mxu0 0.0
  %430 = vmatprep.subr.mxu0 0.0
  %431 = vmatpush1.msra.mxu0 0.0
  %432 = vmatprep.subr.mxu0 0.0
  %433 = vmatpush1.msra.mxu0 0.0
  %434 = vmatprep.subr.mxu0 0.0
  %435 = vmatpush1.msra.mxu0 0.0
  %436 = vmatprep.subr.mxu0 0.0
  %437 = vmatpush1.msra.mxu0 0.0
  %438 = vmatprep.subr.mxu0 0.0
  %439 = vmatpush1.msra.mxu0 0.0
  %440 = vmatprep.subr.mxu0 0.0
  %441 = vmatpush1.msra.mxu0 0.0
  %442 = vmatprep.subr.mxu0 0.0
  %443 = vmatpush1.msra.mxu0 0.0
  %444 = vmatprep.subr.mxu0 0.0
  %445 = vmatpush1.msra.mxu0 0.0
  %446 = vmatprep.subr.mxu0 0.0
  %447 = vmatpush1.msra.mxu0 0.0
  %448 = vmatprep.subr.mxu0 0.0
  %449 = vmatpush1.msra.mxu0 0.0
  %450 = vmatprep.subr.mxu0 0.0
  %451 = vmatpush1.msra.mxu0 0.0
  %452 = vmatprep.subr.mxu0 0.0
  %453 = vmatpush1.msra.mxu0 0.0
  %454 = vmatprep.subr.mxu0 0.0
  %455 = vmatpush1.msra.mxu0 0.0
  %456 = vmatprep.subr.mxu0 0.0
  %457 = vmatpush1.msra.mxu0 0.0
  %458 = vmatprep.subr.mxu0 0.0
  %459 = vmatpush1.msra.mxu0 0.0
  %460 = vmatprep.subr.mxu0 0.0
  %461 = vmatpush1.msra.mxu0 0.0
  %462 = vmatprep.subr.mxu0 0.0
  %463 = vmatpush1.msra.mxu0 0.0
  %464 = vmatprep.subr.mxu0 0.0
  %465 = vmatpush1.msra.mxu0 0.0
  %466 = vmatprep.subr.mxu0 0.0
  %467 = vmatpush1.msra.mxu0 0.0
  %468 = vmatprep.subr.mxu0 0.0
  %469 = vmatpush1.msra.mxu0 0.0
  %470 = vmatprep.subr.mxu0 0.0
  %471 = vmatpush1.msra.mxu0 0.0
  %472 = vmatprep.subr.mxu0 0.0
  %473 = vmatpush1.msra.mxu0 0.0
  %474 = vmatprep.subr.mxu0 0.0
  %475 = vmatpush1.msra.mxu0 0.0
  %476 = vmatprep.subr.mxu0 0.0
  %477 = vmatpush1.msra.mxu0 0.0
  %478 = vmatprep.subr.mxu0 0.0
  %479 = vmatpush1.msra.mxu0 0.0
  %480 = vmatprep.subr.mxu0 0.0
  %481 = vmatpush1.msra.mxu0 0.0
  %482 = vmatprep.mubr.f32.mxu0 0.0
  %483 = vmatmul.mubr.f32.gmra.mrb[0].mxu0 %v416
  %v484 = vpop.f32.mrb[0].mxu0
  %v485 = vadd.f32 0.0, %v484
  %v486 = vpop.f32.mrb[0].mxu0
  %487 = vdwg.mxu0
  %488 = vrot.lane.b32.xlu0 %v130, 96
  %v489 = vpop.permute.xlu0 %488
  %490 = vrot.lane.b32.xlu0 %v321, 96
  %v491 = vpop.permute.xlu0 %490
  %v492 = vsel %vm59, %v489, 0
  %v494 = vsel %vm59, %v491, 0
  %496 = vmatprep.subr.mxu0 0.0
  %497 = vmatpush1.xpose.msra.mxu0 %v494
  %498 = vmatprep.subr.mxu0 0.0
  %499 = vmatpush1.xpose.msra.mxu0 0.0
  %500 = vmatprep.subr.mxu0 0.0
  %501 = vmatpush1.xpose.msra.mxu0 0.0
  %502 = vmatprep.subr.mxu0 0.0
  %503 = vmatpush1.xpose.msra.mxu0 0.0
  %504 = vmatprep.subr.mxu0 0.0
  %505 = vmatpush1.xpose.msra.mxu0 0.0
  %506 = vmatprep.subr.mxu0 0.0
  %507 = vmatpush1.xpose.msra.mxu0 0.0
  %508 = vmatprep.subr.mxu0 0.0
  %509 = vmatpush1.xpose.msra.mxu0 0.0
  %510 = vmatprep.subr.mxu0 0.0
  %511 = vmatpush1.xpose.msra.mxu0 0.0
  %512 = vmatprep.subr.mxu0 0.0
  %513 = vmatpush1.xpose.msra.mxu0 0.0
  %514 = vmatprep.subr.mxu0 0.0
  %515 = vmatpush1.xpose.msra.mxu0 0.0
  %516 = vmatprep.subr.mxu0 0.0
  %517 = vmatpush1.xpose.msra.mxu0 0.0
  %518 = vmatprep.subr.mxu0 0.0
  %519 = vmatpush1.xpose.msra.mxu0 0.0
  %520 = vmatprep.subr.mxu0 0.0
  %521 = vmatpush1.xpose.msra.mxu0 0.0
  %522 = vmatprep.subr.mxu0 0.0
  %523 = vmatpush1.xpose.msra.mxu0 0.0
  %524 = vmatprep.subr.mxu0 0.0
  %525 = vmatpush1.xpose.msra.mxu0 0.0
  %526 = vmatprep.subr.mxu0 0.0
  %527 = vmatpush1.xpose.msra.mxu0 0.0
  %528 = vmatprep.subr.mxu0 0.0
  %529 = vmatpush1.xpose.msra.mxu0 0.0
  %530 = vmatprep.subr.mxu0 0.0
  %531 = vmatpush1.xpose.msra.mxu0 0.0
  %532 = vmatprep.subr.mxu0 0.0
  %533 = vmatpush1.xpose.msra.mxu0 0.0
  %534 = vmatprep.subr.mxu0 0.0
  %535 = vmatpush1.xpose.msra.mxu0 0.0
  %536 = vmatprep.subr.mxu0 0.0
  %537 = vmatpush1.xpose.msra.mxu0 0.0
  %538 = vmatprep.subr.mxu0 0.0
  %539 = vmatpush1.xpose.msra.mxu0 0.0
  %540 = vmatprep.subr.mxu0 0.0
  %541 = vmatpush1.xpose.msra.mxu0 0.0
  %542 = vmatprep.subr.mxu0 0.0
  %543 = vmatpush1.xpose.msra.mxu0 0.0
  %544 = vmatprep.subr.mxu0 0.0
  %545 = vmatpush1.xpose.msra.mxu0 0.0
  %546 = vmatprep.subr.mxu0 0.0
  %547 = vmatpush1.xpose.msra.mxu0 0.0
  %548 = vmatprep.subr.mxu0 0.0
  %549 = vmatpush1.xpose.msra.mxu0 0.0
  %550 = vmatprep.subr.mxu0 0.0
  %551 = vmatpush1.xpose.msra.mxu0 0.0
  %552 = vmatprep.subr.mxu0 0.0
  %553 = vmatpush1.xpose.msra.mxu0 0.0
  %554 = vmatprep.subr.mxu0 0.0
  %555 = vmatpush1.xpose.msra.mxu0 0.0
  %556 = vmatprep.subr.mxu0 0.0
  %557 = vmatpush1.xpose.msra.mxu0 0.0
  %558 = vmatprep.subr.mxu0 0.0
  %559 = vmatpush1.xpose.msra.mxu0 0.0
  %560 = vmatprep.mubr.f32.mxu0 0.0
  %561 = vmatmul.mubr.f32.gmra.mrb[0].mxu0 %v492
  %v562 = vpop.f32.mrb[0].mxu0
  %v563 = vadd.f32 0.0, %v562
  %v564 = vpop.f32.mrb[0].mxu0
  %565 = vdwg.mxu0
  %v566 = vsel %vm400, %v563, -inf
  %567 = vmax.xlane.f32.xlu0 %v566
  %v568 = vpop.xlane.xlu0 %567
  %v569 = vsub.f32 %v563, %v568
  %v570 = vmul.f32 %v569, 1.442695
  %v571 = vpow.pop %v570
  %v572 = vsel %vm400, %v571, 0.0
  %573 = vadd.xlane.f32.xlu0 %v572
  %v574 = vpop.xlane.xlu0 %573
  %v575 = vrcp.pop %v574
  %v576 = vmul.f32 %v571, %v575
  %577 = vrot.lane.b32.xlu0 %v321, 32
  %v578 = vpop.permute.xlu0 %577
  %v581 = vsel %vm400, %v576, 0
  %583 = vmatprep.subr.mxu0 0.0
  %584 = vmatpush1.msra.mxu0 %v578
  %585 = vmatprep.subr.mxu0 0.0
  %586 = vmatpush1.msra.mxu0 0.0
  %587 = vmatprep.subr.mxu0 0.0
  %588 = vmatpush1.msra.mxu0 0.0
  %589 = vmatprep.subr.mxu0 0.0
  %590 = vmatpush1.msra.mxu0 0.0
  %591 = vmatprep.subr.mxu0 0.0
  %592 = vmatpush1.msra.mxu0 0.0
  %593 = vmatprep.subr.mxu0 0.0
  %594 = vmatpush1.msra.mxu0 0.0
  %595 = vmatprep.subr.mxu0 0.0
  %596 = vmatpush1.msra.mxu0 0.0
  %597 = vmatprep.subr.mxu0 0.0
  %598 = vmatpush1.msra.mxu0 0.0
  %599 = vmatprep.subr.mxu0 0.0
  %600 = vmatpush1.msra.mxu0 0.0
  %601 = vmatprep.subr.mxu0 0.0
  %602 = vmatpush1.msra.mxu0 0.0
  %603 = vmatprep.subr.mxu0 0.0
  %604 = vmatpush1.msra.mxu0 0.0
  %605 = vmatprep.subr.mxu0 0.0
  %606 = vmatpush1.msra.mxu0 0.0
  %607 = vmatprep.subr.mxu0 0.0
  %608 = vmatpush1.msra.mxu0 0.0
  %609 = vmatprep.subr.mxu0 0.0
  %610 = vmatpush1.msra.mxu0 0.0
  %611 = vmatprep.subr.mxu0 0.0
  %612 = vmatpush1.msra.mxu0 0.0
  %613 = vmatprep.subr.mxu0 0.0
  %614 = vmatpush1.msra.mxu0 0.0
  %615 = vmatprep.subr.mxu0 0.0
  %616 = vmatpush1.msra.mxu0 0.0
  %617 = vmatprep.subr.mxu0 0.0
  %618 = vmatpush1.msra.mxu0 0.0
  %619 = vmatprep.subr.mxu0 0.0
  %620 = vmatpush1.msra.mxu0 0.0
  %621 = vmatprep.subr.mxu0 0.0
  %622 = vmatpush1.msra.mxu0 0.0
  %623 = vmatprep.subr.mxu0 0.0
  %624 = vmatpush1.msra.mxu0 0.0
  %625 = vmatprep.subr.mxu0 0.0
  %626 = vmatpush1.msra.mxu0 0.0
  %627 = vmatprep.subr.mxu0 0.0
  %628 = vmatpush1.msra.mxu0 0.0
  %629 = vmatprep.subr.mxu0 0.0
  %630 = vmatpush1.msra.mxu0 0.0
  %631 = vmatprep.subr.mxu0 0.0
  %632 = vmatpush1.msra.mxu0 0.0
  %633 = vmatprep.subr.mxu0 0.0
  %634 = vmatpush1.msra.mxu0 0.0
  %635 = vmatprep.subr.mxu0 0.0
  %636 = vmatpush1.msra.mxu0 0.0
  %637 = vmatprep.subr.mxu0 0.0
  %638 = vmatpush1.msra.mxu0 0.0
  %639 = vmatprep.subr.mxu0 0.0
  %640 = vmatpush1.msra.mxu0 0.0
  %641 = vmatprep.subr.mxu0 0.0
  %642 = vmatpush1.msra.mxu0 0.0
  %643 = vmatprep.subr.mxu0 0.0
  %644 = vmatpush1.msra.mxu0 0.0
  %645 = vmatprep.subr.mxu0 0.0
  %646 = vmatpush1.msra.mxu0 0.0
  %647 = vmatprep.mubr.f32.mxu0 0.0
  %648 = vmatmul.mubr.f32.gmra.mrb[0].mxu0 %v581
  %v649 = vpop.f32.mrb[0].mxu0
  %v650 = vadd.f32 0.0, %v649
  %v651 = vpop.f32.mrb[0].mxu0
  %652 = vdwg.mxu0
  %654 = vrot.lane.b32.xlu0 %v650, 32
  %v655 = vpop.permute.xlu0 %654
  %v657 = vsel %vm59, %v485, %v655
  %v658 = vld [vmem:[%s6] sm:$0xff]
  %v659 = vld [vmem:[%s6 + $0x8] sm:$0xff]
  %v660 = vld [vmem:[%s6 + $0x10] sm:$0xff]
  %v661 = vld [vmem:[%s6 + $0x18] sm:$0xff]
  %v662 = vld [vmem:[%s6 + $0x20] sm:$0xff]
  %v663 = vld [vmem:[%s6 + $0x28] sm:$0xff]
  %v664 = vld [vmem:[%s6 + $0x30] sm:$0xff]
  %v665 = vld [vmem:[%s6 + $0x38] sm:$0xff]
  %v666 = vld [vmem:[%s7] sm:$0x1]
  %v668 = vlaneseq
  %v669 = vshrl.u32 %v668, 7
  %v670 = vsub.s32 0, %v669
  %v671 = vrot.slane %v666, %v670
  %v674 = vsel %vm180, %v657, 0
  %676 = vmatprep.subr.mxu0 0.0
  %677 = vmatpush1.msra.mxu0 %v658
  %678 = vmatprep.subr.mxu0 0.0
  %679 = vmatpush1.msra.mxu0 %v659
  %680 = vmatprep.subr.mxu0 0.0
  %681 = vmatpush1.msra.mxu0 %v660
  %682 = vmatprep.subr.mxu0 0.0
  %683 = vmatpush1.msra.mxu0 %v661
  %684 = vmatprep.subr.mxu0 0.0
  %685 = vmatpush1.msra.mxu0 %v662
  %686 = vmatprep.subr.mxu0 0.0
  %687 = vmatpush1.msra.mxu0 %v663
  %688 = vmatprep.subr.mxu0 0.0
  %689 = vmatpush1.msra.mxu0 %v664
  %690 = vmatprep.subr.mxu0 0.0
  %691 = vmatpush1.msra.mxu0 %v665
  %692 = vmatprep.subr.mxu0 0.0
  %693 = vmatpush1.msra.mxu0 0.0
  %694 = vmatprep.subr.mxu0 0.0
  %695 = vmatpush1.msra.mxu0 0.0
  %696 = vmatprep.subr.mxu0 0.0
  %697 = vmatpush1.msra.mxu0 0.0
  %698 = vmatprep.subr.mxu0 0.0
  %699 = vmatpush1.msra.mxu0 0.0
  %700 = vmatprep.subr.mxu0 0.0
  %701 = vmatpush1.msra.mxu0 0.0
  %702 = vmatprep.subr.mxu0 0.0
  %703 = vmatpush1.msra.mxu0 0.0
  %704 = vmatprep.subr.mxu0 0.0
  %705 = vmatpush1.msra.mxu0 0.0
  %706 = vmatprep.subr.mxu0 0.0
  %707 = vmatpush1.msra.mxu0 0.0
  %708 = vmatprep.subr.mxu0 0.0
  %709 = vmatpush1.msra.mxu0 0.0
  %710 = vmatprep.subr.mxu0 0.0
  %711 = vmatpush1.msra.mxu0 0.0
  %712 = vmatprep.subr.mxu0 0.0
  %713 = vmatpush1.msra.mxu0 0.0
  %714 = vmatprep.subr.mxu0 0.0
  %715 = vmatpush1.msra.mxu0 0.0
  %716 = vmatprep.subr.mxu0 0.0
  %717 = vmatpush1.msra.mxu0 0.0
  %718 = vmatprep.subr.mxu0 0.0
  %719 = vmatpush1.msra.mxu0 0.0
  %720 = vmatprep.subr.mxu0 0.0
  %721 = vmatpush1.msra.mxu0 0.0
  %722 = vmatprep.subr.mxu0 0.0
  %723 = vmatpush1.msra.mxu0 0.0
  %724 = vmatprep.subr.mxu0 0.0
  %725 = vmatpush1.msra.mxu0 0.0
  %726 = vmatprep.subr.mxu0 0.0
  %727 = vmatpush1.msra.mxu0 0.0
  %728 = vmatprep.subr.mxu0 0.0
  %729 = vmatpush1.msra.mxu0 0.0
  %730 = vmatprep.subr.mxu0 0.0
  %731 = vmatpush1.msra.mxu0 0.0
  %732 = vmatprep.subr.mxu0 0.0
  %733 = vmatpush1.msra.mxu0 0.0
  %734 = vmatprep.subr.mxu0 0.0
  %735 = vmatpush1.msra.mxu0 0.0
  %736 = vmatprep.subr.mxu0 0.0
  %737 = vmatpush1.msra.mxu0 0.0
  %738 = vmatprep.subr.mxu0 0.0
  %739 = vmatpush1.msra.mxu0 0.0
  %740 = vmatprep.mubr.f32.mxu0 0.0
  %741 = vmatmul.mubr.f32.gmra.mrb[0].mxu0 %v674
  %v742 = vpop.f32.mrb[0].mxu0
  %v743 = vadd.f32 %v671, %v742
  %v744 = vpop.f32.mrb[0].mxu0
  %745 = vdwg.mxu0
  %v746 = vld [vmem:[%s8] sm:$0xff]
  %v747 = vld [vmem:[%s8 + $0x8] sm:$0xff]
  %v748 = vld [vmem:[%s8 + $0x10] sm:$0xff]
  %v749 = vld [vmem:[%s8 + $0x18] sm:$0xff]
  %v750 = vld [vmem:[%s9] sm:$0xff]
  %v751 = vld [vmem:[%s9 + $0x8] sm:$0xff]
  %v752 = vld [vmem:[%s9 + $0x10] sm:$0xff]
  %v753 = vld [vmem:[%s9 + $0x18] sm:$0xff]
  %v754 = vld [vmem:[%s9 + $0x20] sm:$0xff]
  %v755 = vld [vmem:[%s9 + $0x28] sm:$0xff]
  %v756 = vld [vmem:[%s9 + $0x30] sm:$0xff]
  %v757 = vld [vmem:[%s9 + $0x38] sm:$0xff]
  %v759 = vsel %vm180, %v743, 0
  %761 = vmatprep.subr.mxu0 0.0
  %762 = vmatpush1.msra.mxu0 %v750
  %763 = vmatprep.subr.mxu0 0.0
  %764 = vmatpush1.msra.mxu0 %v751
  %765 = vmatprep.subr.mxu0 0.0
  %766 = vmatpush1.msra.mxu0 %v752
  %767 = vmatprep.subr.mxu0 0.0
  %768 = vmatpush1.msra.mxu0 %v753
  %769 = vmatprep.subr.mxu0 0.0
  %770 = vmatpush1.msra.mxu0 %v754
  %771 = vmatprep.subr.mxu0 0.0
  %772 = vmatpush1.msra.mxu0 %v755
  %773 = vmatprep.subr.mxu0 0.0
  %774 = vmatpush1.msra.mxu0 %v756
  %775 = vmatprep.subr.mxu0 0.0
  %776 = vmatpush1.msra.mxu0 %v757
  %777 = vmatprep.subr.mxu0 0.0
  %778 = vmatpush1.msra.mxu0 0.0
  %779 = vmatprep.subr.mxu0 0.0
  %780 = vmatpush1.msra.mxu0 0.0
  %781 = vmatprep.subr.mxu0 0.0
  %782 = vmatpush1.msra.mxu0 0.0
  %783 = vmatprep.subr.mxu0 0.0
  %784 = vmatpush1.msra.mxu0 0.0
  %785 = vmatprep.subr.mxu0 0.0
  %786 = vmatpush1.msra.mxu0 0.0
  %787 = vmatprep.subr.mxu0 0.0
  %788 = vmatpush1.msra.mxu0 0.0
  %789 = vmatprep.subr.mxu0 0.0
  %790 = vmatpush1.msra.mxu0 0.0
  %791 = vmatprep.subr.mxu0 0.0
  %792 = vmatpush1.msra.mxu0 0.0
  %793 = vmatprep.subr.mxu0 0.0
  %794 = vmatpush1.msra.mxu0 0.0
  %795 = vmatprep.subr.mxu0 0.0
  %796 = vmatpush1.msra.mxu0 0.0
  %797 = vmatprep.subr.mxu0 0.0
  %798 = vmatpush1.msra.mxu0 0.0
  %799 = vmatprep.subr.mxu0 0.0
  %800 = vmatpush1.msra.mxu0 0.0
  %801 = vmatprep.subr.mxu0 0.0
  %802 = vmatpush1.msra.mxu0 0.0
  %803 = vmatprep.subr.mxu0 0.0
  %804 = vmatpush1.msra.mxu0 0.0
  %805 = vmatprep.subr.mxu0 0.0
  %806 = vmatpush1.msra.mxu0 0.0
  %807 = vmatprep.subr.mxu0 0.0
  %808 = vmatpush1.msra.mxu0 0.0
  %809 = vmatprep.subr.mxu0 0.0
  %810 = vmatpush1.msra.mxu0 0.0
  %811 = vmatprep.subr.mxu0 0.0
  %812 = vmatpush1.msra.mxu0 0.0
  %813 = vmatprep.subr.mxu0 0.0
  %814 = vmatpush1.msra.mxu0 0.0
  %815 = vmatprep.subr.mxu0 0.0
  %816 = vmatpush1.msra.mxu0 0.0
  %817 = vmatprep.subr.mxu0 0.0
  %818 = vmatpush1.msra.mxu0 0.0
  %819 = vmatprep.subr.mxu0 0.0
  %820 = vmatpush1.msra.mxu0 0.0
  %821 = vmatprep.subr.mxu0 0.0
  %822 = vmatpush1.msra.mxu0 0.0
  %823 = vmatprep.subr.mxu0 0.0
  %824 = vmatpush1.msra.mxu0 0.0
  %825 = vmatprep.mubr.f32.mxu0 0.0
  %826 = vmatmul.mubr.f32.gmra.mrb[0].mxu0 %v759
  %v827 = vpop.f32.mrb[0].mxu0
  %v828 = vadd.f32 0.0, %v827
  %v829 = vpop.f32.mrb[0].mxu0
  %830 = vdwg.mxu0
  %831 = vmatprep.subr.mxu0 0.0
  %832 = vmatpush1.msra.mxu0 %v746
  %833 = vmatprep.subr.mxu0 0.0
  %834 = vmatpush1.msra.mxu0 %v747
  %835 = vmatprep.subr.mxu0 0.0
  %836 = vmatpush1.msra.mxu0 %v748
  %837 = vmatprep.subr.mxu0 0.0
  %838 = vmatpush1.msra.mxu0 %v749
  %839 = vmatprep.subr.mxu0 0.0
  %840 = vmatpush1.msra.mxu0 0.0
  %841 = vmatprep.subr.mxu0 0.0
  %842 = vmatpush1.msra.mxu0 0.0
  %843 = vmatprep.subr.mxu0 0.0
  %844 = vmatpush1.msra.mxu0 0.0
  %845 = vmatprep.subr.mxu0 0.0
  %846 = vmatpush1.msra.mxu0 0.0
  %847 = vmatprep.subr.mxu0 0.0
  %848 = vmatpush1.msra.mxu0 0.0
  %849 = vmatprep.subr.mxu0 0.0
  %850 = vmatpush1.msra.mxu0 0.0
  %851 = vmatprep.subr.mxu0 0.0
  %852 = vmatpush1.msra.mxu0 0.0
  %853 = vmatprep.subr.mxu0 0.0
  %854 = vmatpush1.msra.mxu0 0.0
  %855 = vmatprep.subr.mxu0 0.0
  %856 = vmatpush1.msra.mxu0 0.0
  %857 = vmatprep.subr.mxu0 0.0
  %858 = vmatpush1.msra.mxu0 0.0
  %859 = vmatprep.subr.mxu0 0.0
  %860 = vmatpush1.msra.mxu0 0.0
  %861 = vmatprep.subr.mxu0 0.0
  %862 = vmatpush1.msra.mxu0 0.0
  %863 = vmatprep.subr.mxu0 0.0
  %864 = vmatpush1.msra.mxu0 0.0
  %865 = vmatprep.subr.mxu0 0.0
  %866 = vmatpush1.msra.mxu0 0.0
  %867 = vmatprep.subr.mxu0 0.0
  %868 = vmatpush1.msra.mxu0 0.0
  %869 = vmatprep.subr.mxu0 0.0
  %870 = vmatpush1.msra.mxu0 0.0
  %871 = vmatprep.subr.mxu0 0.0
  %872 = vmatpush1.msra.mxu0 0.0
  %873 = vmatprep.subr.mxu0 0.0
  %874 = vmatpush1.msra.mxu0 0.0
  %875 = vmatprep.subr.mxu0 0.0
  %876 = vmatpush1.msra.mxu0 0.0
  %877 = vmatprep.subr.mxu0 0.0
  %878 = vmatpush1.msra.mxu0 0.0
  %879 = vmatprep.subr.mxu0 0.0
  %880 = vmatpush1.msra.mxu0 0.0
  %881 = vmatprep.subr.mxu0 0.0
  %882 = vmatpush1.msra.mxu0 0.0
  %883 = vmatprep.subr.mxu0 0.0
  %884 = vmatpush1.msra.mxu0 0.0
  %885 = vmatprep.subr.mxu0 0.0
  %886 = vmatpush1.msra.mxu0 0.0
  %887 = vmatprep.subr.mxu0 0.0
  %888 = vmatpush1.msra.mxu0 0.0
  %889 = vmatprep.subr.mxu0 0.0
  %890 = vmatpush1.msra.mxu0 0.0
  %891 = vmatprep.subr.mxu0 0.0
  %892 = vmatpush1.msra.mxu0 0.0
  %893 = vmatprep.subr.mxu0 0.0
  %894 = vmatpush1.msra.mxu0 0.0
  %895 = vmatprep.mubr.f32.mxu0 0.0
  %896 = vmatmul.mubr.f32.gmra.mrb[0].mxu0 %v61
  %v897 = vpop.f32.mrb[0].mxu0
  %v898 = vadd.f32 %v828, %v897
  %v899 = vpop.f32.mrb[0].mxu0
  %900 = vdwg.mxu0
  %v901 = vld [vmem:[%s10] sm:$0x1]
  %v903 = vlaneseq
  %v904 = vshrl.u32 %v903, 7
  %v905 = vsub.s32 0, %v904
  %v906 = vrot.slane %v901, %v905
  %v908 = vadd.f32 %v898, %v906
  %v909 = vmax.f32 %v908, 0.0
  %v910 = vld [vmem:[%s11] sm:$0xff]
  %v911 = vld [vmem:[%s11 + $0x8] sm:$0xff]
  %v912 = vld [vmem:[%s11 + $0x10] sm:$0xff]
  %v913 = vld [vmem:[%s11 + $0x18] sm:$0xff]
  %v914 = vld [vmem:[%s12] sm:$0x1]
  %v916 = vlaneseq
  %v917 = vshrl.u32 %v916, 7
  %v918 = vsub.s32 0, %v917
  %v919 = vrot.slane %v914, %v918
  %v922 = vsel %vm59, %v909, 0
  %924 = vmatprep.subr.mxu0 0.0
  %925 = vmatpush1.msra.mxu0 %v910
  %926 = vmatprep.subr.mxu0 0.0
  %927 = vmatpush1.msra.mxu0 %v911
  %928 = vmatprep.subr.mxu0 0.0
  %929 = vmatpush1.msra.mxu0 %v912
  %930 = vmatprep.subr.mxu0 0.0
  %931 = vmatpush1.msra.mxu0 %v913
  %932 = vmatprep.subr.mxu0 0.0
  %933 = vmatpush1.msra.mxu0 0.0
  %934 = vmatprep.subr.mxu0 0.0
  %935 = vmatpush1.msra.mxu0 0.0
  %936 = vmatprep.subr.mxu0 0.0
  %937 = vmatpush1.msra.mxu0 0.0
  %938 = vmatprep.subr.mxu0 0.0
  %939 = vmatpush1.msra.mxu0 0.0
  %940 = vmatprep.subr.mxu0 0.0
  %941 = vmatpush1.msra.mxu0 0.0
  %942 = vmatprep.subr.mxu0 0.0
  %943 = vmatpush1.msra.mxu0 0.0
  %944 = vmatprep.subr.mxu0 0.0
  %945 = vmatpush1.msra.mxu0 0.0
  %946 = vmatprep.subr.mxu0 0.0
  %947 = vmatpush1.msra.mxu0 0.0
  %948 = vmatprep.subr.mxu0 0.0
  %949 = vmatpush1.msra.mxu0 0.0
  %950 = vmatprep.subr.mxu0 0.0
  %951 = vmatpush1.msra.mxu0 0.0
  %952 = vmatprep.subr.mxu0 0.0
  %953 = vmatpush1.msra.mxu0 0.0
  %954 = vmatprep.subr.mxu0 0.0
  %955 = vmatpush1.msra.mxu0 0.0
  %956 = vmatprep.subr.mxu0 0.0
  %957 = vmatpush1.msra.mxu0 0.0
  %958 = vmatprep.subr.mxu0 0.0
  %959 = vmatpush1.msra.mxu0 0.0
  %960 = vmatprep.subr.mxu0 0.0
  %961 = vmatpush1.msra.mxu0 0.0
  %962 = vmatprep.subr.mxu0 0.0
  %963 = vmatpush1.msra.mxu0 0.0
  %964 = vmatprep.subr.mxu0 0.0
  %965 = vmatpush1.msra.mxu0 0.0
  %966 = vmatprep.subr.mxu0 0.0
  %967 = vmatpush1.msra.mxu0 0.0
  %968 = vmatprep.subr.mxu0 0.0
  %969 = vmatpush1.msra.mxu0 0.0
  %970 = vmatprep.subr.mxu0 0.0
  %971 = vmatpush1.msra.mxu0 0.0
  %972 = vmatprep.subr.mxu0 0.0
  %973 = vmatpush1.msra.mxu0 0.0
  %974 = vmatprep.subr.mxu0 0.0
  %975 = vmatpush1.msra.mxu0 0.0
  %976 = vmatprep.subr.mxu0 0.0
  %977 = vmatpush1.msra.mxu0 0.0
  %978 = vmatprep.subr.mxu0 0.0
  %979 = vmatpush1.msra.mxu0 0.0
  %980 = vmatprep.subr.mxu0 0.0
  %981 = vmatpush1.msra.mxu0 0.0
  %982 = vmatprep.subr.mxu0 0.0
  %983 = vmatpush1.msra.mxu0 0.0
  %984 = vmatprep.subr.mxu0 0.0
  %985 = vmatpush1.msra.mxu0 0.0
  %986 = vmatprep.subr.mxu0 0.0
  %987 = vmatpush1.msra.mxu0 0.0
  %988 = vmatprep.mubr.f32.mxu0 0.0
  %989 = vmatmul.mubr.f32.gmra.mrb[0].mxu0 %v922
  %v990 = vpop.f32.mrb[0].mxu0
  %v991 = vadd.f32 %v919, %v990
  %v992 = vpop.f32.mrb[0].mxu0
  %993 = vdwg.mxu0
  %994 = vst.msk [vmem:[%s13] sm:$0xff] %vm59, %v991
  // Predicated region
  $region54: #{_device_forward.2} parent=0 // pred_check
    _
  $region55: #{_device_forward.2} parent=0 // pred_check_branch
    %996 = sbr.rel (0) target = $region57
  $region56: #{_device_forward.2} parent=0 // pred_region
    _
  $region57: #{_device_forward.2} parent=0 // pred_fallthru
    _
  // Predicated region
  $region58: #{_device_forward.2} parent=0 // pred_check
    _
  $region59: #{_device_forward.2} parent=0 // pred_check_branch
    %998 = sbr.rel (0) target = $region61
  $region60: #{_device_forward.2} parent=0 // pred_region
    _
  $region61: #{_device_forward.2} parent=0 // pred_fallthru
    _

</llo_original>
